<compile_context>
chip_gen: v7x
topology: tpu7x:2x2x1
jax: 0.10.0
libtpu: 0.0.40
codegen_flags: <defaults>
</compile_context>

<pallas_src>
import functools

import jax
import jax.numpy as jnp
from jax.experimental import pallas as pl
from jax.experimental.pallas import tpu as pltpu  # noqa: F401  (TPU backend module)


# ----------------------------------------------------------------------------
# Fused kernel: all GRU layers + fc(relu(last-step)) in one invocation.
# Gate order follows PyTorch: [r, z, n].
# ----------------------------------------------------------------------------
def _gru_fused_kernel(n_layers, T, Bp, H, x_ref, h0_ref, *rest):
    """rest = [wih_t, whh_t, bias, b_hn] * n_layers + [wfc_t, bfc, out_ref, hT_ref]"""
    layer_refs = rest[:4 * n_layers]
    wfc_ref, bfc_ref, out_ref, hT_ref = rest[4 * n_layers:]

    x_all = x_ref[...]                                     # (T*Bp, Din) layer-0 input
    h = None
    for layer in range(n_layers):
        wih_ref, whh_ref, bias_ref, bhn_ref = layer_refs[4 * layer:4 * layer + 4]

        # ---- hoisted input-to-hidden projection for ALL timesteps (bf16 MXU) ----
        gi_all = (jnp.dot(x_all.astype(jnp.bfloat16), wih_ref[...],
                          preferred_element_type=jnp.float32)
                  + bias_ref[...])                         # (T*Bp, 3H) f32

        whh = whh_ref[...]                                 # (H, 3H) bf16, loaded once
        bhn = jnp.broadcast_to(bhn_ref[...], (Bp, H))      # hoisted broadcast
        h = h0_ref[layer]                                  # (Bp, H) f32

        # ---- sequential recurrence; T small & static -> unrolled ----
        hs = []                                            # per-step h (stays in vregs)
        for t in range(T):
            gi = gi_all[t * Bp:(t + 1) * Bp, :]            # sublane-aligned static slice
            gh = jnp.dot(h.astype(jnp.bfloat16), whh,
                         preferred_element_type=jnp.float32)       # (Bp, 3H)
            rz = jax.nn.sigmoid(gi[:, :2 * H] + gh[:, :2 * H])     # fused r/z gates
            r = rz[:, :H]
            z = rz[:, H:]
            n = jnp.tanh(gi[:, 2 * H:] + r * (gh[:, 2 * H:] + bhn))
            h = (1.0 - z) * n + z * h
            if layer < n_layers - 1:                       # feeds next layer
                hs.append(h)
        hT_ref[layer] = h                                  # write once per layer
        if layer < n_layers - 1:
            x_all = jnp.concatenate(hs, axis=0)            # (T*Bp, H) inter-layer acts

    # ---- fc(relu(out[:, -1])):  out[:, -1] of last layer == its final h ----
    y = (jnp.dot(jnp.maximum(h, 0.0).astype(jnp.bfloat16), wfc_ref[...],
                 preferred_element_type=jnp.float32) + bfc_ref[...])
    out_ref[...] = y.astype(out_ref.dtype)


# ----------------------------------------------------------------------------
# One-time parameter repack (run OUTSIDE jit): transpose weights (bf16), fold biases.
# ----------------------------------------------------------------------------
def prepare_params(params, n_layers):
    H = params["gru"][0]["w_hh"].shape[-1]
    flat = []
    for layer in range(n_layers):
        p = params["gru"][layer]
        wih_t = jnp.transpose(p["w_ih"]).astype(jnp.bfloat16)     # (Din_l, 3H)
        whh_t = jnp.transpose(p["w_hh"]).astype(jnp.bfloat16)     # (H, 3H)
        # Fold b_ih (all gates) + the r/z parts of b_hh into the hoisted gi bias;
        # b_hn must stay separate because it is multiplied by r.
        bias = p["b_ih"] + jnp.concatenate(
            [p["b_hh"][:2 * H], jnp.zeros((H,), p["b_hh"].dtype)])
        flat += [wih_t, whh_t, bias.reshape(1, 3 * H),
                 p["b_hh"][2 * H:].reshape(1, H)]
    wfc_t = jnp.transpose(params["fc"]["w"]).astype(jnp.bfloat16)  # (H, O)
    bfc = params["fc"]["b"].reshape(1, -1)                         # (1, O)
    return tuple(flat), wfc_t, bfc


# ----------------------------------------------------------------------------
# Full GRUmodel.forward
# ----------------------------------------------------------------------------
@functools.partial(jax.jit, static_argnames=("n_layers",))
def gru_model_forward(x, h, prepared, n_layers):
    """x: (B, T, input_dim) batch_first.  h: (n_layers, B, hidden).
    Returns (out (B, output_dim), h' (n_layers, B, hidden))."""
    flat, wfc_t, bfc = prepared
    B, T, Din = x.shape
    H = h.shape[-1]
    O = wfc_t.shape[-1]
    Bp = max(8, ((B + 7) // 8) * 8)          # sublane-aligned batch

    # time-major, zero-pad batch to Bp, flatten to (T*Bp, Din)
    x_t = jnp.transpose(x, (1, 0, 2))                         # (T, B, Din)
    x_t = jnp.pad(x_t, ((0, 0), (0, Bp - B), (0, 0)))
    x2 = x_t.reshape(T * Bp, Din)
    h_p = jnp.pad(h, ((0, 0), (0, Bp - B), (0, 0)))           # (n_layers, Bp, H)

    kernel = functools.partial(_gru_fused_kernel, n_layers, T, Bp, H)
    out, h_out = pl.pallas_call(
        kernel,
        out_shape=(jax.ShapeDtypeStruct((Bp, O), jnp.float32),
                   jax.ShapeDtypeStruct((n_layers, Bp, H), jnp.float32)),
        input_output_aliases={1: 1},          # reuse h0 buffer for h_out
    )(x2, h_p, *flat, wfc_t, bfc)
    # TODO(synk): nn.GRU inter-layer dropout (p=0.2) applies only in training mode;
    # eval/inference forward has no dropout, so it is omitted here.
    return out[:B], h_out[:, :B]


# ----------------------------------------------------------------------------
# Pure-JAX reference (for correctness check) -- operates on raw f32 params.
# ----------------------------------------------------------------------------
def gru_model_reference(x, h, params, n_layers):
    x_t = jnp.transpose(x, (1, 0, 2))
    inp = x_t
    h_finals = []
    for layer in range(n_layers):
        p = params["gru"][layer]
        H = h.shape[-1]

        def step(h_prev, x_step, p=p, H=H):
            gi = x_step @ p["w_ih"].T + p["b_ih"]
            gh = h_prev @ p["w_hh"].T + p["b_hh"]
            r = jax.nn.sigmoid(gi[:, :H] + gh[:, :H])
            z = jax.nn.sigmoid(gi[:, H:2 * H] + gh[:, H:2 * H])
            n = jnp.tanh(gi[:, 2 * H:] + r * gh[:, 2 * H:])
            h_new = (1.0 - z) * n + z * h_prev
            return h_new, h_new

        hT, out = jax.lax.scan(step, h[layer], inp)
        h_finals.append(hT)
        inp = out
    last = inp[-1]
    y = jnp.maximum(last, 0.0) @ params["fc"]["w"].T + params["fc"]["b"]
    return y, jnp.stack(h_finals, 0)


# ----------------------------------------------------------------------------
# Deterministic parameter init (PyTorch-like U(-1/sqrt(H), 1/sqrt(H)))
# ----------------------------------------------------------------------------
def init_params(key, input_dim, hidden_dim, output_dim, n_layers):
    stdv = 1.0 / jnp.sqrt(hidden_dim)
    params = {"gru": [], "fc": {}}
    for layer in range(n_layers):
        din = input_dim if layer == 0 else hidden_dim
        key, k1, k2, k3, k4 = jax.random.split(key, 5)
        params["gru"].append({
            "w_ih": jax.random.uniform(k1, (3 * hidden_dim, din), jnp.float32, -stdv, stdv),
            "w_hh": jax.random.uniform(k2, (3 * hidden_dim, hidden_dim), jnp.float32, -stdv, stdv),
            "b_ih": jax.random.uniform(k3, (3 * hidden_dim,), jnp.float32, -stdv, stdv),
            "b_hh": jax.random.uniform(k4, (3 * hidden_dim,), jnp.float32, -stdv, stdv),
        })
    key, k1, k2 = jax.random.split(key, 3)
    params["fc"]["w"] = jax.random.uniform(k1, (output_dim, hidden_dim), jnp.float32, -stdv, stdv)
    params["fc"]["b"] = jax.random.uniform(k2, (output_dim,), jnp.float32, -stdv, stdv)
    return params


if __name__ == "__main__":
    input_dim, hidden_dim, output_dim, n_layers = 8, 32, 4, 2
    batch, seq = 2, 8

    key = jax.random.PRNGKey(0)
    kx, kp = jax.random.split(key)
    x = jax.random.normal(kx, (batch, seq, input_dim), jnp.float32)
    h0 = jnp.zeros((n_layers, batch, hidden_dim), jnp.float32)   # init_hidden
    params = init_params(kp, input_dim, hidden_dim, output_dim, n_layers)
    prepared = prepare_params(params, n_layers)                  # one-time repack

    out, h_next = gru_model_forward(x, h0, prepared, n_layers=n_layers)
    out, h_next = jax.block_until_ready(out), jax.block_until_ready(h_next)

    out_ref, h_ref = gru_model_reference(x, h0, params, n_layers)
    assert out.shape == (batch, output_dim)
    assert h_next.shape == (n_layers, batch, hidden_dim)
    # Tolerance relaxed for bf16 MXU operands (f32 accumulation, f32 gate math).
    assert jnp.allclose(out, out_ref, atol=5e-2, rtol=5e-2)
    assert jnp.allclose(h_next, h_ref, atol=5e-2, rtol=5e-2)

    print("KERNEL_OK")
</pallas_src>

<mosaic_0001>
module attributes {stable_mosaic.version = 11 : i64} {
  func.func @_gru_fused_kernel(%arg0: memref<64x8xf32, #tpu.memory_space<vmem>>, %arg1: memref<2x8x32xf32, #tpu.memory_space<vmem>>, %arg2: memref<8x96xbf16, #tpu.memory_space<vmem>>, %arg3: memref<32x96xbf16, #tpu.memory_space<vmem>>, %arg4: memref<1x96xf32, #tpu.memory_space<vmem>>, %arg5: memref<1x32xf32, #tpu.memory_space<vmem>>, %arg6: memref<32x96xbf16, #tpu.memory_space<vmem>>, %arg7: memref<32x96xbf16, #tpu.memory_space<vmem>>, %arg8: memref<1x96xf32, #tpu.memory_space<vmem>>, %arg9: memref<1x32xf32, #tpu.memory_space<vmem>>, %arg10: memref<32x4xbf16, #tpu.memory_space<vmem>>, %arg11: memref<1x4xf32, #tpu.memory_space<vmem>>, %arg12: memref<8x4xf32, #tpu.memory_space<vmem>>, %arg13: memref<2x8x32xf32, #tpu.memory_space<vmem>>) attributes {dimension_semantics = [], scalar_prefetch = 0 : i64, scratch_operands = 0 : i64, tpu.core_type = #tpu.core_type<tc>} {
    %c0 = arith.constant 0 : index
    %c0_0 = arith.constant 0 : index
    %0 = vector.load %arg0[%c0, %c0_0] : memref<64x8xf32, #tpu.memory_space<vmem>>, vector<64x8xf32>
    %1 = arith.truncf %0 : vector<64x8xf32> to vector<64x8xbf16>
    %c0_1 = arith.constant 0 : index
    %c0_2 = arith.constant 0 : index
    %2 = vector.load %arg2[%c0_1, %c0_2] : memref<8x96xbf16, #tpu.memory_space<vmem>>, vector<8x96xbf16>
    %cst = arith.constant dense<0.000000e+00> : vector<64x96xf32>
    %3 = tpu.matmul %1, %2, %cst {dimension_numbers = #tpu.dot_dimension_numbers<[1], [0], [0], [1], [0, 0, 1, 1], [], []>} : vector<64x8xbf16>, vector<8x96xbf16>, vector<64x96xf32> -> vector<64x96xf32>
    %c0_3 = arith.constant 0 : index
    %c0_4 = arith.constant 0 : index
    %4 = vector.load %arg4[%c0_3, %c0_4] : memref<1x96xf32, #tpu.memory_space<vmem>>, vector<1x96xf32>
    %5 = vector.broadcast %4 : vector<1x96xf32> to vector<64x96xf32>
    %6 = arith.addf %3, %5 : vector<64x96xf32>
    %c0_5 = arith.constant 0 : index
    %c0_6 = arith.constant 0 : index
    %7 = vector.load %arg3[%c0_5, %c0_6] : memref<32x96xbf16, #tpu.memory_space<vmem>>, vector<32x96xbf16>
    %c0_7 = arith.constant 0 : index
    %c0_8 = arith.constant 0 : index
    %8 = vector.load %arg5[%c0_7, %c0_8] : memref<1x32xf32, #tpu.memory_space<vmem>>, vector<1x32xf32>
    %9 = vector.shape_cast %8 : vector<1x32xf32> to vector<1x32xf32>
    %10 = vector.broadcast %9 : vector<1x32xf32> to vector<8x32xf32>
    %c0_9 = arith.constant 0 : index
    %c0_10 = arith.constant 0 : index
    %c0_11 = arith.constant 0 : index
    %11 = vector.load %arg1[%c0_9, %c0_10, %c0_11] : memref<2x8x32xf32, #tpu.memory_space<vmem>>, vector<1x8x32xf32>
    %12 = vector.shape_cast %11 : vector<1x8x32xf32> to vector<8x32xf32>
    %13 = vector.extract_strided_slice %6 {offsets = [0, 0], sizes = [8, 96], strides = [1, 1]} : vector<64x96xf32> to vector<8x96xf32>
    %14 = arith.truncf %12 : vector<8x32xf32> to vector<8x32xbf16>
    %cst_12 = arith.constant dense<0.000000e+00> : vector<8x96xf32>
    %15 = tpu.matmul %14, %7, %cst_12 {dimension_numbers = #tpu.dot_dimension_numbers<[1], [0], [0], [1], [0, 0, 1, 1], [], []>} : vector<8x32xbf16>, vector<32x96xbf16>, vector<8x96xf32> -> vector<8x96xf32>
    %16 = vector.extract_strided_slice %13 {offsets = [0, 0], sizes = [8, 64], strides = [1, 1]} : vector<8x96xf32> to vector<8x64xf32>
    %17 = vector.extract_strided_slice %15 {offsets = [0, 0], sizes = [8, 64], strides = [1, 1]} : vector<8x96xf32> to vector<8x64xf32>
    %18 = arith.addf %16, %17 : vector<8x64xf32>
    %19 = arith.negf %18 : vector<8x64xf32>
    %20 = math.exp %19 : vector<8x64xf32>
    %cst_13 = arith.constant 1.000000e+00 : f32
    %21 = vector.broadcast %cst_13 : f32 to vector<8x64xf32>
    %22 = arith.addf %21, %20 : vector<8x64xf32>
    %23 = arith.divf %21, %22 : vector<8x64xf32>
    %24 = vector.extract_strided_slice %23 {offsets = [0, 0], sizes = [8, 32], strides = [1, 1]} : vector<8x64xf32> to vector<8x32xf32>
    %25 = vector.extract_strided_slice %23 {offsets = [0, 32], sizes = [8, 32], strides = [1, 1]} : vector<8x64xf32> to vector<8x32xf32>
    %26 = vector.extract_strided_slice %13 {offsets = [0, 64], sizes = [8, 32], strides = [1, 1]} : vector<8x96xf32> to vector<8x32xf32>
    %27 = vector.extract_strided_slice %15 {offsets = [0, 64], sizes = [8, 32], strides = [1, 1]} : vector<8x96xf32> to vector<8x32xf32>
    %28 = arith.addf %27, %10 : vector<8x32xf32>
    %29 = arith.mulf %24, %28 : vector<8x32xf32>
    %30 = arith.addf %26, %29 : vector<8x32xf32>
    %31 = math.tanh %30 : vector<8x32xf32>
    %cst_14 = arith.constant 1.000000e+00 : f32
    %32 = vector.broadcast %cst_14 : f32 to vector<8x32xf32>
    %33 = arith.subf %32, %25 : vector<8x32xf32>
    %34 = arith.mulf %33, %31 : vector<8x32xf32>
    %35 = arith.mulf %25, %12 : vector<8x32xf32>
    %36 = arith.addf %34, %35 : vector<8x32xf32>
    %37 = vector.extract_strided_slice %6 {offsets = [8, 0], sizes = [8, 96], strides = [1, 1]} : vector<64x96xf32> to vector<8x96xf32>
    %38 = arith.truncf %36 : vector<8x32xf32> to vector<8x32xbf16>
    %cst_15 = arith.constant dense<0.000000e+00> : vector<8x96xf32>
    %39 = tpu.matmul %38, %7, %cst_15 {dimension_numbers = #tpu.dot_dimension_numbers<[1], [0], [0], [1], [0, 0, 1, 1], [], []>} : vector<8x32xbf16>, vector<32x96xbf16>, vector<8x96xf32> -> vector<8x96xf32>
    %40 = vector.extract_strided_slice %37 {offsets = [0, 0], sizes = [8, 64], strides = [1, 1]} : vector<8x96xf32> to vector<8x64xf32>
    %41 = vector.extract_strided_slice %39 {offsets = [0, 0], sizes = [8, 64], strides = [1, 1]} : vector<8x96xf32> to vector<8x64xf32>
    %42 = arith.addf %40, %41 : vector<8x64xf32>
    %43 = arith.negf %42 : vector<8x64xf32>
    %44 = math.exp %43 : vector<8x64xf32>
    %cst_16 = arith.constant 1.000000e+00 : f32
    %45 = vector.broadcast %cst_16 : f32 to vector<8x64xf32>
    %46 = arith.addf %45, %44 : vector<8x64xf32>
    %47 = arith.divf %45, %46 : vector<8x64xf32>
    %48 = vector.extract_strided_slice %47 {offsets = [0, 0], sizes = [8, 32], strides = [1, 1]} : vector<8x64xf32> to vector<8x32xf32>
    %49 = vector.extract_strided_slice %47 {offsets = [0, 32], sizes = [8, 32], strides = [1, 1]} : vector<8x64xf32> to vector<8x32xf32>
    %50 = vector.extract_strided_slice %37 {offsets = [0, 64], sizes = [8, 32], strides = [1, 1]} : vector<8x96xf32> to vector<8x32xf32>
    %51 = vector.extract_strided_slice %39 {offsets = [0, 64], sizes = [8, 32], strides = [1, 1]} : vector<8x96xf32> to vector<8x32xf32>
    %52 = arith.addf %51, %10 : vector<8x32xf32>
    %53 = arith.mulf %48, %52 : vector<8x32xf32>
    %54 = arith.addf %50, %53 : vector<8x32xf32>
    %55 = math.tanh %54 : vector<8x32xf32>
    %cst_17 = arith.constant 1.000000e+00 : f32
    %56 = vector.broadcast %cst_17 : f32 to vector<8x32xf32>
    %57 = arith.subf %56, %49 : vector<8x32xf32>
    %58 = arith.mulf %57, %55 : vector<8x32xf32>
    %59 = arith.mulf %49, %36 : vector<8x32xf32>
    %60 = arith.addf %58, %59 : vector<8x32xf32>
    %61 = vector.extract_strided_slice %6 {offsets = [16, 0], sizes = [8, 96], strides = [1, 1]} : vector<64x96xf32> to vector<8x96xf32>
    %62 = arith.truncf %60 : vector<8x32xf32> to vector<8x32xbf16>
    %cst_18 = arith.constant dense<0.000000e+00> : vector<8x96xf32>
    %63 = tpu.matmul %62, %7, %cst_18 {dimension_numbers = #tpu.dot_dimension_numbers<[1], [0], [0], [1], [0, 0, 1, 1], [], []>} : vector<8x32xbf16>, vector<32x96xbf16>, vector<8x96xf32> -> vector<8x96xf32>
    %64 = vector.extract_strided_slice %61 {offsets = [0, 0], sizes = [8, 64], strides = [1, 1]} : vector<8x96xf32> to vector<8x64xf32>
    %65 = vector.extract_strided_slice %63 {offsets = [0, 0], sizes = [8, 64], strides = [1, 1]} : vector<8x96xf32> to vector<8x64xf32>
    %66 = arith.addf %64, %65 : vector<8x64xf32>
    %67 = arith.negf %66 : vector<8x64xf32>
    %68 = math.exp %67 : vector<8x64xf32>
    %cst_19 = arith.constant 1.000000e+00 : f32
    %69 = vector.broadcast %cst_19 : f32 to vector<8x64xf32>
    %70 = arith.addf %69, %68 : vector<8x64xf32>
    %71 = arith.divf %69, %70 : vector<8x64xf32>
    %72 = vector.extract_strided_slice %71 {offsets = [0, 0], sizes = [8, 32], strides = [1, 1]} : vector<8x64xf32> to vector<8x32xf32>
    %73 = vector.extract_strided_slice %71 {offsets = [0, 32], sizes = [8, 32], strides = [1, 1]} : vector<8x64xf32> to vector<8x32xf32>
    %74 = vector.extract_strided_slice %61 {offsets = [0, 64], sizes = [8, 32], strides = [1, 1]} : vector<8x96xf32> to vector<8x32xf32>
    %75 = vector.extract_strided_slice %63 {offsets = [0, 64], sizes = [8, 32], strides = [1, 1]} : vector<8x96xf32> to vector<8x32xf32>
    %76 = arith.addf %75, %10 : vector<8x32xf32>
    %77 = arith.mulf %72, %76 : vector<8x32xf32>
    %78 = arith.addf %74, %77 : vector<8x32xf32>
    %79 = math.tanh %78 : vector<8x32xf32>
    %cst_20 = arith.constant 1.000000e+00 : f32
    %80 = vector.broadcast %cst_20 : f32 to vector<8x32xf32>
    %81 = arith.subf %80, %73 : vector<8x32xf32>
    %82 = arith.mulf %81, %79 : vector<8x32xf32>
    %83 = arith.mulf %73, %60 : vector<8x32xf32>
    %84 = arith.addf %82, %83 : vector<8x32xf32>
    %85 = vector.extract_strided_slice %6 {offsets = [24, 0], sizes = [8, 96], strides = [1, 1]} : vector<64x96xf32> to vector<8x96xf32>
    %86 = arith.truncf %84 : vector<8x32xf32> to vector<8x32xbf16>
    %cst_21 = arith.constant dense<0.000000e+00> : vector<8x96xf32>
    %87 = tpu.matmul %86, %7, %cst_21 {dimension_numbers = #tpu.dot_dimension_numbers<[1], [0], [0], [1], [0, 0, 1, 1], [], []>} : vector<8x32xbf16>, vector<32x96xbf16>, vector<8x96xf32> -> vector<8x96xf32>
    %88 = vector.extract_strided_slice %85 {offsets = [0, 0], sizes = [8, 64], strides = [1, 1]} : vector<8x96xf32> to vector<8x64xf32>
    %89 = vector.extract_strided_slice %87 {offsets = [0, 0], sizes = [8, 64], strides = [1, 1]} : vector<8x96xf32> to vector<8x64xf32>
    %90 = arith.addf %88, %89 : vector<8x64xf32>
    %91 = arith.negf %90 : vector<8x64xf32>
    %92 = math.exp %91 : vector<8x64xf32>
    %cst_22 = arith.constant 1.000000e+00 : f32
    %93 = vector.broadcast %cst_22 : f32 to vector<8x64xf32>
    %94 = arith.addf %93, %92 : vector<8x64xf32>
    %95 = arith.divf %93, %94 : vector<8x64xf32>
    %96 = vector.extract_strided_slice %95 {offsets = [0, 0], sizes = [8, 32], strides = [1, 1]} : vector<8x64xf32> to vector<8x32xf32>
    %97 = vector.extract_strided_slice %95 {offsets = [0, 32], sizes = [8, 32], strides = [1, 1]} : vector<8x64xf32> to vector<8x32xf32>
    %98 = vector.extract_strided_slice %85 {offsets = [0, 64], sizes = [8, 32], strides = [1, 1]} : vector<8x96xf32> to vector<8x32xf32>
    %99 = vector.extract_strided_slice %87 {offsets = [0, 64], sizes = [8, 32], strides = [1, 1]} : vector<8x96xf32> to vector<8x32xf32>
    %100 = arith.addf %99, %10 : vector<8x32xf32>
    %101 = arith.mulf %96, %100 : vector<8x32xf32>
    %102 = arith.addf %98, %101 : vector<8x32xf32>
    %103 = math.tanh %102 : vector<8x32xf32>
    %cst_23 = arith.constant 1.000000e+00 : f32
    %104 = vector.broadcast %cst_23 : f32 to vector<8x32xf32>
    %105 = arith.subf %104, %97 : vector<8x32xf32>
    %106 = arith.mulf %105, %103 : vector<8x32xf32>
    %107 = arith.mulf %97, %84 : vector<8x32xf32>
    %108 = arith.addf %106, %107 : vector<8x32xf32>
    %109 = vector.extract_strided_slice %6 {offsets = [32, 0], sizes = [8, 96], strides = [1, 1]} : vector<64x96xf32> to vector<8x96xf32>
    %110 = arith.truncf %108 : vector<8x32xf32> to vector<8x32xbf16>
    %cst_24 = arith.constant dense<0.000000e+00> : vector<8x96xf32>
    %111 = tpu.matmul %110, %7, %cst_24 {dimension_numbers = #tpu.dot_dimension_numbers<[1], [0], [0], [1], [0, 0, 1, 1], [], []>} : vector<8x32xbf16>, vector<32x96xbf16>, vector<8x96xf32> -> vector<8x96xf32>
    %112 = vector.extract_strided_slice %109 {offsets = [0, 0], sizes = [8, 64], strides = [1, 1]} : vector<8x96xf32> to vector<8x64xf32>
    %113 = vector.extract_strided_slice %111 {offsets = [0, 0], sizes = [8, 64], strides = [1, 1]} : vector<8x96xf32> to vector<8x64xf32>
    %114 = arith.addf %112, %113 : vector<8x64xf32>
    %115 = arith.negf %114 : vector<8x64xf32>
    %116 = math.exp %115 : vector<8x64xf32>
    %cst_25 = arith.constant 1.000000e+00 : f32
    %117 = vector.broadcast %cst_25 : f32 to vector<8x64xf32>
    %118 = arith.addf %117, %116 : vector<8x64xf32>
    %119 = arith.divf %117, %118 : vector<8x64xf32>
    %120 = vector.extract_strided_slice %119 {offsets = [0, 0], sizes = [8, 32], strides = [1, 1]} : vector<8x64xf32> to vector<8x32xf32>
    %121 = vector.extract_strided_slice %119 {offsets = [0, 32], sizes = [8, 32], strides = [1, 1]} : vector<8x64xf32> to vector<8x32xf32>
    %122 = vector.extract_strided_slice %109 {offsets = [0, 64], sizes = [8, 32], strides = [1, 1]} : vector<8x96xf32> to vector<8x32xf32>
    %123 = vector.extract_strided_slice %111 {offsets = [0, 64], sizes = [8, 32], strides = [1, 1]} : vector<8x96xf32> to vector<8x32xf32>
    %124 = arith.addf %123, %10 : vector<8x32xf32>
    %125 = arith.mulf %120, %124 : vector<8x32xf32>
    %126 = arith.addf %122, %125 : vector<8x32xf32>
    %127 = math.tanh %126 : vector<8x32xf32>
    %cst_26 = arith.constant 1.000000e+00 : f32
    %128 = vector.broadcast %cst_26 : f32 to vector<8x32xf32>
    %129 = arith.subf %128, %121 : vector<8x32xf32>
    %130 = arith.mulf %129, %127 : vector<8x32xf32>
    %131 = arith.mulf %121, %108 : vector<8x32xf32>
    %132 = arith.addf %130, %131 : vector<8x32xf32>
    %133 = vector.extract_strided_slice %6 {offsets = [40, 0], sizes = [8, 96], strides = [1, 1]} : vector<64x96xf32> to vector<8x96xf32>
    %134 = arith.truncf %132 : vector<8x32xf32> to vector<8x32xbf16>
    %cst_27 = arith.constant dense<0.000000e+00> : vector<8x96xf32>
    %135 = tpu.matmul %134, %7, %cst_27 {dimension_numbers = #tpu.dot_dimension_numbers<[1], [0], [0], [1], [0, 0, 1, 1], [], []>} : vector<8x32xbf16>, vector<32x96xbf16>, vector<8x96xf32> -> vector<8x96xf32>
    %136 = vector.extract_strided_slice %133 {offsets = [0, 0], sizes = [8, 64], strides = [1, 1]} : vector<8x96xf32> to vector<8x64xf32>
    %137 = vector.extract_strided_slice %135 {offsets = [0, 0], sizes = [8, 64], strides = [1, 1]} : vector<8x96xf32> to vector<8x64xf32>
    %138 = arith.addf %136, %137 : vector<8x64xf32>
    %139 = arith.negf %138 : vector<8x64xf32>
    %140 = math.exp %139 : vector<8x64xf32>
    %cst_28 = arith.constant 1.000000e+00 : f32
    %141 = vector.broadcast %cst_28 : f32 to vector<8x64xf32>
    %142 = arith.addf %141, %140 : vector<8x64xf32>
    %143 = arith.divf %141, %142 : vector<8x64xf32>
    %144 = vector.extract_strided_slice %143 {offsets = [0, 0], sizes = [8, 32], strides = [1, 1]} : vector<8x64xf32> to vector<8x32xf32>
    %145 = vector.extract_strided_slice %143 {offsets = [0, 32], sizes = [8, 32], strides = [1, 1]} : vector<8x64xf32> to vector<8x32xf32>
    %146 = vector.extract_strided_slice %133 {offsets = [0, 64], sizes = [8, 32], strides = [1, 1]} : vector<8x96xf32> to vector<8x32xf32>
    %147 = vector.extract_strided_slice %135 {offsets = [0, 64], sizes = [8, 32], strides = [1, 1]} : vector<8x96xf32> to vector<8x32xf32>
    %148 = arith.addf %147, %10 : vector<8x32xf32>
    %149 = arith.mulf %144, %148 : vector<8x32xf32>
    %150 = arith.addf %146, %149 : vector<8x32xf32>
    %151 = math.tanh %150 : vector<8x32xf32>
    %cst_29 = arith.constant 1.000000e+00 : f32
    %152 = vector.broadcast %cst_29 : f32 to vector<8x32xf32>
    %153 = arith.subf %152, %145 : vector<8x32xf32>
    %154 = arith.mulf %153, %151 : vector<8x32xf32>
    %155 = arith.mulf %145, %132 : vector<8x32xf32>
    %156 = arith.addf %154, %155 : vector<8x32xf32>
    %157 = vector.extract_strided_slice %6 {offsets = [48, 0], sizes = [8, 96], strides = [1, 1]} : vector<64x96xf32> to vector<8x96xf32>
    %158 = arith.truncf %156 : vector<8x32xf32> to vector<8x32xbf16>
    %cst_30 = arith.constant dense<0.000000e+00> : vector<8x96xf32>
    %159 = tpu.matmul %158, %7, %cst_30 {dimension_numbers = #tpu.dot_dimension_numbers<[1], [0], [0], [1], [0, 0, 1, 1], [], []>} : vector<8x32xbf16>, vector<32x96xbf16>, vector<8x96xf32> -> vector<8x96xf32>
    %160 = vector.extract_strided_slice %157 {offsets = [0, 0], sizes = [8, 64], strides = [1, 1]} : vector<8x96xf32> to vector<8x64xf32>
    %161 = vector.extract_strided_slice %159 {offsets = [0, 0], sizes = [8, 64], strides = [1, 1]} : vector<8x96xf32> to vector<8x64xf32>
    %162 = arith.addf %160, %161 : vector<8x64xf32>
    %163 = arith.negf %162 : vector<8x64xf32>
    %164 = math.exp %163 : vector<8x64xf32>
    %cst_31 = arith.constant 1.000000e+00 : f32
    %165 = vector.broadcast %cst_31 : f32 to vector<8x64xf32>
    %166 = arith.addf %165, %164 : vector<8x64xf32>
    %167 = arith.divf %165, %166 : vector<8x64xf32>
    %168 = vector.extract_strided_slice %167 {offsets = [0, 0], sizes = [8, 32], strides = [1, 1]} : vector<8x64xf32> to vector<8x32xf32>
    %169 = vector.extract_strided_slice %167 {offsets = [0, 32], sizes = [8, 32], strides = [1, 1]} : vector<8x64xf32> to vector<8x32xf32>
    %170 = vector.extract_strided_slice %157 {offsets = [0, 64], sizes = [8, 32], strides = [1, 1]} : vector<8x96xf32> to vector<8x32xf32>
    %171 = vector.extract_strided_slice %159 {offsets = [0, 64], sizes = [8, 32], strides = [1, 1]} : vector<8x96xf32> to vector<8x32xf32>
    %172 = arith.addf %171, %10 : vector<8x32xf32>
    %173 = arith.mulf %168, %172 : vector<8x32xf32>
    %174 = arith.addf %170, %173 : vector<8x32xf32>
    %175 = math.tanh %174 : vector<8x32xf32>
    %cst_32 = arith.constant 1.000000e+00 : f32
    %176 = vector.broadcast %cst_32 : f32 to vector<8x32xf32>
    %177 = arith.subf %176, %169 : vector<8x32xf32>
    %178 = arith.mulf %177, %175 : vector<8x32xf32>
    %179 = arith.mulf %169, %156 : vector<8x32xf32>
    %180 = arith.addf %178, %179 : vector<8x32xf32>
    %181 = vector.extract_strided_slice %6 {offsets = [56, 0], sizes = [8, 96], strides = [1, 1]} : vector<64x96xf32> to vector<8x96xf32>
    %182 = arith.truncf %180 : vector<8x32xf32> to vector<8x32xbf16>
    %cst_33 = arith.constant dense<0.000000e+00> : vector<8x96xf32>
    %183 = tpu.matmul %182, %7, %cst_33 {dimension_numbers = #tpu.dot_dimension_numbers<[1], [0], [0], [1], [0, 0, 1, 1], [], []>} : vector<8x32xbf16>, vector<32x96xbf16>, vector<8x96xf32> -> vector<8x96xf32>
    %184 = vector.extract_strided_slice %181 {offsets = [0, 0], sizes = [8, 64], strides = [1, 1]} : vector<8x96xf32> to vector<8x64xf32>
    %185 = vector.extract_strided_slice %183 {offsets = [0, 0], sizes = [8, 64], strides = [1, 1]} : vector<8x96xf32> to vector<8x64xf32>
    %186 = arith.addf %184, %185 : vector<8x64xf32>
    %187 = arith.negf %186 : vector<8x64xf32>
    %188 = math.exp %187 : vector<8x64xf32>
    %cst_34 = arith.constant 1.000000e+00 : f32
    %189 = vector.broadcast %cst_34 : f32 to vector<8x64xf32>
    %190 = arith.addf %189, %188 : vector<8x64xf32>
    %191 = arith.divf %189, %190 : vector<8x64xf32>
    %192 = vector.extract_strided_slice %191 {offsets = [0, 0], sizes = [8, 32], strides = [1, 1]} : vector<8x64xf32> to vector<8x32xf32>
    %193 = vector.extract_strided_slice %191 {offsets = [0, 32], sizes = [8, 32], strides = [1, 1]} : vector<8x64xf32> to vector<8x32xf32>
    %194 = vector.extract_strided_slice %181 {offsets = [0, 64], sizes = [8, 32], strides = [1, 1]} : vector<8x96xf32> to vector<8x32xf32>
    %195 = vector.extract_strided_slice %183 {offsets = [0, 64], sizes = [8, 32], strides = [1, 1]} : vector<8x96xf32> to vector<8x32xf32>
    %196 = arith.addf %195, %10 : vector<8x32xf32>
    %197 = arith.mulf %192, %196 : vector<8x32xf32>
    %198 = arith.addf %194, %197 : vector<8x32xf32>
    %199 = math.tanh %198 : vector<8x32xf32>
    %cst_35 = arith.constant 1.000000e+00 : f32
    %200 = vector.broadcast %cst_35 : f32 to vector<8x32xf32>
    %201 = arith.subf %200, %193 : vector<8x32xf32>
    %202 = arith.mulf %201, %199 : vector<8x32xf32>
    %203 = arith.mulf %193, %180 : vector<8x32xf32>
    %204 = arith.addf %202, %203 : vector<8x32xf32>
    %c0_36 = arith.constant 0 : index
    %c0_37 = arith.constant 0 : index
    %c0_38 = arith.constant 0 : index
    %205 = vector.load %arg13[%c0_36, %c0_37, %c0_38] : memref<2x8x32xf32, #tpu.memory_space<vmem>>, vector<1x8x32xf32>
    %206 = vector.shape_cast %205 : vector<1x8x32xf32> to vector<8x32xf32>
    %207 = vector.shape_cast %204 : vector<8x32xf32> to vector<1x8x32xf32>
    tpu.vector_store %arg13[%c0_36, %c0_37, %c0_38], %207 {strides = array<i32>} : memref<2x8x32xf32, #tpu.memory_space<vmem>>, vector<1x8x32xf32>,
    %208 = tpu.concatenate %36, %60, %84, %108, %132, %156, %180, %204 in 0 : vector<8x32xf32>, vector<8x32xf32>, vector<8x32xf32>, vector<8x32xf32>, vector<8x32xf32>, vector<8x32xf32>, vector<8x32xf32>, vector<8x32xf32> -> vector<64x32xf32>
    %209 = arith.truncf %208 : vector<64x32xf32> to vector<64x32xbf16>
    %c0_39 = arith.constant 0 : index
    %c0_40 = arith.constant 0 : index
    %210 = vector.load %arg6[%c0_39, %c0_40] : memref<32x96xbf16, #tpu.memory_space<vmem>>, vector<32x96xbf16>
    %cst_41 = arith.constant dense<0.000000e+00> : vector<64x96xf32>
    %211 = tpu.matmul %209, %210, %cst_41 {dimension_numbers = #tpu.dot_dimension_numbers<[1], [0], [0], [1], [0, 0, 1, 1], [], []>} : vector<64x32xbf16>, vector<32x96xbf16>, vector<64x96xf32> -> vector<64x96xf32>
    %c0_42 = arith.constant 0 : index
    %c0_43 = arith.constant 0 : index
    %212 = vector.load %arg8[%c0_42, %c0_43] : memref<1x96xf32, #tpu.memory_space<vmem>>, vector<1x96xf32>
    %213 = vector.broadcast %212 : vector<1x96xf32> to vector<64x96xf32>
    %214 = arith.addf %211, %213 : vector<64x96xf32>
    %c0_44 = arith.constant 0 : index
    %c0_45 = arith.constant 0 : index
    %215 = vector.load %arg7[%c0_44, %c0_45] : memref<32x96xbf16, #tpu.memory_space<vmem>>, vector<32x96xbf16>
    %c0_46 = arith.constant 0 : index
    %c0_47 = arith.constant 0 : index
    %216 = vector.load %arg9[%c0_46, %c0_47] : memref<1x32xf32, #tpu.memory_space<vmem>>, vector<1x32xf32>
    %217 = vector.shape_cast %216 : vector<1x32xf32> to vector<1x32xf32>
    %218 = vector.broadcast %217 : vector<1x32xf32> to vector<8x32xf32>
    %c1 = arith.constant 1 : index
    %c0_48 = arith.constant 0 : index
    %c0_49 = arith.constant 0 : index
    %219 = vector.load %arg1[%c1, %c0_48, %c0_49] : memref<2x8x32xf32, #tpu.memory_space<vmem>>, vector<1x8x32xf32>
    %220 = vector.shape_cast %219 : vector<1x8x32xf32> to vector<8x32xf32>
    %221 = vector.extract_strided_slice %214 {offsets = [0, 0], sizes = [8, 96], strides = [1, 1]} : vector<64x96xf32> to vector<8x96xf32>
    %222 = arith.truncf %220 : vector<8x32xf32> to vector<8x32xbf16>
    %cst_50 = arith.constant dense<0.000000e+00> : vector<8x96xf32>
    %223 = tpu.matmul %222, %215, %cst_50 {dimension_numbers = #tpu.dot_dimension_numbers<[1], [0], [0], [1], [0, 0, 1, 1], [], []>} : vector<8x32xbf16>, vector<32x96xbf16>, vector<8x96xf32> -> vector<8x96xf32>
    %224 = vector.extract_strided_slice %221 {offsets = [0, 0], sizes = [8, 64], strides = [1, 1]} : vector<8x96xf32> to vector<8x64xf32>
    %225 = vector.extract_strided_slice %223 {offsets = [0, 0], sizes = [8, 64], strides = [1, 1]} : vector<8x96xf32> to vector<8x64xf32>
    %226 = arith.addf %224, %225 : vector<8x64xf32>
    %227 = arith.negf %226 : vector<8x64xf32>
    %228 = math.exp %227 : vector<8x64xf32>
    %cst_51 = arith.constant 1.000000e+00 : f32
    %229 = vector.broadcast %cst_51 : f32 to vector<8x64xf32>
    %230 = arith.addf %229, %228 : vector<8x64xf32>
    %231 = arith.divf %229, %230 : vector<8x64xf32>
    %232 = vector.extract_strided_slice %231 {offsets = [0, 0], sizes = [8, 32], strides = [1, 1]} : vector<8x64xf32> to vector<8x32xf32>
    %233 = vector.extract_strided_slice %231 {offsets = [0, 32], sizes = [8, 32], strides = [1, 1]} : vector<8x64xf32> to vector<8x32xf32>
    %234 = vector.extract_strided_slice %221 {offsets = [0, 64], sizes = [8, 32], strides = [1, 1]} : vector<8x96xf32> to vector<8x32xf32>
    %235 = vector.extract_strided_slice %223 {offsets = [0, 64], sizes = [8, 32], strides = [1, 1]} : vector<8x96xf32> to vector<8x32xf32>
    %236 = arith.addf %235, %218 : vector<8x32xf32>
    %237 = arith.mulf %232, %236 : vector<8x32xf32>
    %238 = arith.addf %234, %237 : vector<8x32xf32>
    %239 = math.tanh %238 : vector<8x32xf32>
    %cst_52 = arith.constant 1.000000e+00 : f32
    %240 = vector.broadcast %cst_52 : f32 to vector<8x32xf32>
    %241 = arith.subf %240, %233 : vector<8x32xf32>
    %242 = arith.mulf %241, %239 : vector<8x32xf32>
    %243 = arith.mulf %233, %220 : vector<8x32xf32>
    %244 = arith.addf %242, %243 : vector<8x32xf32>
    %245 = vector.extract_strided_slice %214 {offsets = [8, 0], sizes = [8, 96], strides = [1, 1]} : vector<64x96xf32> to vector<8x96xf32>
    %246 = arith.truncf %244 : vector<8x32xf32> to vector<8x32xbf16>
    %cst_53 = arith.constant dense<0.000000e+00> : vector<8x96xf32>
    %247 = tpu.matmul %246, %215, %cst_53 {dimension_numbers = #tpu.dot_dimension_numbers<[1], [0], [0], [1], [0, 0, 1, 1], [], []>} : vector<8x32xbf16>, vector<32x96xbf16>, vector<8x96xf32> -> vector<8x96xf32>
    %248 = vector.extract_strided_slice %245 {offsets = [0, 0], sizes = [8, 64], strides = [1, 1]} : vector<8x96xf32> to vector<8x64xf32>
    %249 = vector.extract_strided_slice %247 {offsets = [0, 0], sizes = [8, 64], strides = [1, 1]} : vector<8x96xf32> to vector<8x64xf32>
    %250 = arith.addf %248, %249 : vector<8x64xf32>
    %251 = arith.negf %250 : vector<8x64xf32>
    %252 = math.exp %251 : vector<8x64xf32>
    %cst_54 = arith.constant 1.000000e+00 : f32
    %253 = vector.broadcast %cst_54 : f32 to vector<8x64xf32>
    %254 = arith.addf %253, %252 : vector<8x64xf32>
    %255 = arith.divf %253, %254 : vector<8x64xf32>
    %256 = vector.extract_strided_slice %255 {offsets = [0, 0], sizes = [8, 32], strides = [1, 1]} : vector<8x64xf32> to vector<8x32xf32>
    %257 = vector.extract_strided_slice %255 {offsets = [0, 32], sizes = [8, 32], strides = [1, 1]} : vector<8x64xf32> to vector<8x32xf32>
    %258 = vector.extract_strided_slice %245 {offsets = [0, 64], sizes = [8, 32], strides = [1, 1]} : vector<8x96xf32> to vector<8x32xf32>
    %259 = vector.extract_strided_slice %247 {offsets = [0, 64], sizes = [8, 32], strides = [1, 1]} : vector<8x96xf32> to vector<8x32xf32>
    %260 = arith.addf %259, %218 : vector<8x32xf32>
    %261 = arith.mulf %256, %260 : vector<8x32xf32>
    %262 = arith.addf %258, %261 : vector<8x32xf32>
    %263 = math.tanh %262 : vector<8x32xf32>
    %cst_55 = arith.constant 1.000000e+00 : f32
    %264 = vector.broadcast %cst_55 : f32 to vector<8x32xf32>
    %265 = arith.subf %264, %257 : vector<8x32xf32>
    %266 = arith.mulf %265, %263 : vector<8x32xf32>
    %267 = arith.mulf %257, %244 : vector<8x32xf32>
    %268 = arith.addf %266, %267 : vector<8x32xf32>
    %269 = vector.extract_strided_slice %214 {offsets = [16, 0], sizes = [8, 96], strides = [1, 1]} : vector<64x96xf32> to vector<8x96xf32>
    %270 = arith.truncf %268 : vector<8x32xf32> to vector<8x32xbf16>
    %cst_56 = arith.constant dense<0.000000e+00> : vector<8x96xf32>
    %271 = tpu.matmul %270, %215, %cst_56 {dimension_numbers = #tpu.dot_dimension_numbers<[1], [0], [0], [1], [0, 0, 1, 1], [], []>} : vector<8x32xbf16>, vector<32x96xbf16>, vector<8x96xf32> -> vector<8x96xf32>
    %272 = vector.extract_strided_slice %269 {offsets = [0, 0], sizes = [8, 64], strides = [1, 1]} : vector<8x96xf32> to vector<8x64xf32>
    %273 = vector.extract_strided_slice %271 {offsets = [0, 0], sizes = [8, 64], strides = [1, 1]} : vector<8x96xf32> to vector<8x64xf32>
    %274 = arith.addf %272, %273 : vector<8x64xf32>
    %275 = arith.negf %274 : vector<8x64xf32>
    %276 = math.exp %275 : vector<8x64xf32>
    %cst_57 = arith.constant 1.000000e+00 : f32
    %277 = vector.broadcast %cst_57 : f32 to vector<8x64xf32>
    %278 = arith.addf %277, %276 : vector<8x64xf32>
    %279 = arith.divf %277, %278 : vector<8x64xf32>
    %280 = vector.extract_strided_slice %279 {offsets = [0, 0], sizes = [8, 32], strides = [1, 1]} : vector<8x64xf32> to vector<8x32xf32>
    %281 = vector.extract_strided_slice %279 {offsets = [0, 32], sizes = [8, 32], strides = [1, 1]} : vector<8x64xf32> to vector<8x32xf32>
    %282 = vector.extract_strided_slice %269 {offsets = [0, 64], sizes = [8, 32], strides = [1, 1]} : vector<8x96xf32> to vector<8x32xf32>
    %283 = vector.extract_strided_slice %271 {offsets = [0, 64], sizes = [8, 32], strides = [1, 1]} : vector<8x96xf32> to vector<8x32xf32>
    %284 = arith.addf %283, %218 : vector<8x32xf32>
    %285 = arith.mulf %280, %284 : vector<8x32xf32>
    %286 = arith.addf %282, %285 : vector<8x32xf32>
    %287 = math.tanh %286 : vector<8x32xf32>
    %cst_58 = arith.constant 1.000000e+00 : f32
    %288 = vector.broadcast %cst_58 : f32 to vector<8x32xf32>
    %289 = arith.subf %288, %281 : vector<8x32xf32>
    %290 = arith.mulf %289, %287 : vector<8x32xf32>
    %291 = arith.mulf %281, %268 : vector<8x32xf32>
    %292 = arith.addf %290, %291 : vector<8x32xf32>
    %293 = vector.extract_strided_slice %214 {offsets = [24, 0], sizes = [8, 96], strides = [1, 1]} : vector<64x96xf32> to vector<8x96xf32>
    %294 = arith.truncf %292 : vector<8x32xf32> to vector<8x32xbf16>
    %cst_59 = arith.constant dense<0.000000e+00> : vector<8x96xf32>
    %295 = tpu.matmul %294, %215, %cst_59 {dimension_numbers = #tpu.dot_dimension_numbers<[1], [0], [0], [1], [0, 0, 1, 1], [], []>} : vector<8x32xbf16>, vector<32x96xbf16>, vector<8x96xf32> -> vector<8x96xf32>
    %296 = vector.extract_strided_slice %293 {offsets = [0, 0], sizes = [8, 64], strides = [1, 1]} : vector<8x96xf32> to vector<8x64xf32>
    %297 = vector.extract_strided_slice %295 {offsets = [0, 0], sizes = [8, 64], strides = [1, 1]} : vector<8x96xf32> to vector<8x64xf32>
    %298 = arith.addf %296, %297 : vector<8x64xf32>
    %299 = arith.negf %298 : vector<8x64xf32>
    %300 = math.exp %299 : vector<8x64xf32>
    %cst_60 = arith.constant 1.000000e+00 : f32
    %301 = vector.broadcast %cst_60 : f32 to vector<8x64xf32>
    %302 = arith.addf %301, %300 : vector<8x64xf32>
    %303 = arith.divf %301, %302 : vector<8x64xf32>
    %304 = vector.extract_strided_slice %303 {offsets = [0, 0], sizes = [8, 32], strides = [1, 1]} : vector<8x64xf32> to vector<8x32xf32>
    %305 = vector.extract_strided_slice %303 {offsets = [0, 32], sizes = [8, 32], strides = [1, 1]} : vector<8x64xf32> to vector<8x32xf32>
    %306 = vector.extract_strided_slice %293 {offsets = [0, 64], sizes = [8, 32], strides = [1, 1]} : vector<8x96xf32> to vector<8x32xf32>
    %307 = vector.extract_strided_slice %295 {offsets = [0, 64], sizes = [8, 32], strides = [1, 1]} : vector<8x96xf32> to vector<8x32xf32>
    %308 = arith.addf %307, %218 : vector<8x32xf32>
    %309 = arith.mulf %304, %308 : vector<8x32xf32>
    %310 = arith.addf %306, %309 : vector<8x32xf32>
    %311 = math.tanh %310 : vector<8x32xf32>
    %cst_61 = arith.constant 1.000000e+00 : f32
    %312 = vector.broadcast %cst_61 : f32 to vector<8x32xf32>
    %313 = arith.subf %312, %305 : vector<8x32xf32>
    %314 = arith.mulf %313, %311 : vector<8x32xf32>
    %315 = arith.mulf %305, %292 : vector<8x32xf32>
    %316 = arith.addf %314, %315 : vector<8x32xf32>
    %317 = vector.extract_strided_slice %214 {offsets = [32, 0], sizes = [8, 96], strides = [1, 1]} : vector<64x96xf32> to vector<8x96xf32>
    %318 = arith.truncf %316 : vector<8x32xf32> to vector<8x32xbf16>
    %cst_62 = arith.constant dense<0.000000e+00> : vector<8x96xf32>
    %319 = tpu.matmul %318, %215, %cst_62 {dimension_numbers = #tpu.dot_dimension_numbers<[1], [0], [0], [1], [0, 0, 1, 1], [], []>} : vector<8x32xbf16>, vector<32x96xbf16>, vector<8x96xf32> -> vector<8x96xf32>
    %320 = vector.extract_strided_slice %317 {offsets = [0, 0], sizes = [8, 64], strides = [1, 1]} : vector<8x96xf32> to vector<8x64xf32>
    %321 = vector.extract_strided_slice %319 {offsets = [0, 0], sizes = [8, 64], strides = [1, 1]} : vector<8x96xf32> to vector<8x64xf32>
    %322 = arith.addf %320, %321 : vector<8x64xf32>
    %323 = arith.negf %322 : vector<8x64xf32>
    %324 = math.exp %323 : vector<8x64xf32>
    %cst_63 = arith.constant 1.000000e+00 : f32
    %325 = vector.broadcast %cst_63 : f32 to vector<8x64xf32>
    %326 = arith.addf %325, %324 : vector<8x64xf32>
    %327 = arith.divf %325, %326 : vector<8x64xf32>
    %328 = vector.extract_strided_slice %327 {offsets = [0, 0], sizes = [8, 32], strides = [1, 1]} : vector<8x64xf32> to vector<8x32xf32>
    %329 = vector.extract_strided_slice %327 {offsets = [0, 32], sizes = [8, 32], strides = [1, 1]} : vector<8x64xf32> to vector<8x32xf32>
    %330 = vector.extract_strided_slice %317 {offsets = [0, 64], sizes = [8, 32], strides = [1, 1]} : vector<8x96xf32> to vector<8x32xf32>
    %331 = vector.extract_strided_slice %319 {offsets = [0, 64], sizes = [8, 32], strides = [1, 1]} : vector<8x96xf32> to vector<8x32xf32>
    %332 = arith.addf %331, %218 : vector<8x32xf32>
    %333 = arith.mulf %328, %332 : vector<8x32xf32>
    %334 = arith.addf %330, %333 : vector<8x32xf32>
    %335 = math.tanh %334 : vector<8x32xf32>
    %cst_64 = arith.constant 1.000000e+00 : f32
    %336 = vector.broadcast %cst_64 : f32 to vector<8x32xf32>
    %337 = arith.subf %336, %329 : vector<8x32xf32>
    %338 = arith.mulf %337, %335 : vector<8x32xf32>
    %339 = arith.mulf %329, %316 : vector<8x32xf32>
    %340 = arith.addf %338, %339 : vector<8x32xf32>
    %341 = vector.extract_strided_slice %214 {offsets = [40, 0], sizes = [8, 96], strides = [1, 1]} : vector<64x96xf32> to vector<8x96xf32>
    %342 = arith.truncf %340 : vector<8x32xf32> to vector<8x32xbf16>
    %cst_65 = arith.constant dense<0.000000e+00> : vector<8x96xf32>
    %343 = tpu.matmul %342, %215, %cst_65 {dimension_numbers = #tpu.dot_dimension_numbers<[1], [0], [0], [1], [0, 0, 1, 1], [], []>} : vector<8x32xbf16>, vector<32x96xbf16>, vector<8x96xf32> -> vector<8x96xf32>
    %344 = vector.extract_strided_slice %341 {offsets = [0, 0], sizes = [8, 64], strides = [1, 1]} : vector<8x96xf32> to vector<8x64xf32>
    %345 = vector.extract_strided_slice %343 {offsets = [0, 0], sizes = [8, 64], strides = [1, 1]} : vector<8x96xf32> to vector<8x64xf32>
    %346 = arith.addf %344, %345 : vector<8x64xf32>
    %347 = arith.negf %346 : vector<8x64xf32>
    %348 = math.exp %347 : vector<8x64xf32>
    %cst_66 = arith.constant 1.000000e+00 : f32
    %349 = vector.broadcast %cst_66 : f32 to vector<8x64xf32>
    %350 = arith.addf %349, %348 : vector<8x64xf32>
    %351 = arith.divf %349, %350 : vector<8x64xf32>
    %352 = vector.extract_strided_slice %351 {offsets = [0, 0], sizes = [8, 32], strides = [1, 1]} : vector<8x64xf32> to vector<8x32xf32>
    %353 = vector.extract_strided_slice %351 {offsets = [0, 32], sizes = [8, 32], strides = [1, 1]} : vector<8x64xf32> to vector<8x32xf32>
    %354 = vector.extract_strided_slice %341 {offsets = [0, 64], sizes = [8, 32], strides = [1, 1]} : vector<8x96xf32> to vector<8x32xf32>
    %355 = vector.extract_strided_slice %343 {offsets = [0, 64], sizes = [8, 32], strides = [1, 1]} : vector<8x96xf32> to vector<8x32xf32>
    %356 = arith.addf %355, %218 : vector<8x32xf32>
    %357 = arith.mulf %352, %356 : vector<8x32xf32>
    %358 = arith.addf %354, %357 : vector<8x32xf32>
    %359 = math.tanh %358 : vector<8x32xf32>
    %cst_67 = arith.constant 1.000000e+00 : f32
    %360 = vector.broadcast %cst_67 : f32 to vector<8x32xf32>
    %361 = arith.subf %360, %353 : vector<8x32xf32>
    %362 = arith.mulf %361, %359 : vector<8x32xf32>
    %363 = arith.mulf %353, %340 : vector<8x32xf32>
    %364 = arith.addf %362, %363 : vector<8x32xf32>
    %365 = vector.extract_strided_slice %214 {offsets = [48, 0], sizes = [8, 96], strides = [1, 1]} : vector<64x96xf32> to vector<8x96xf32>
    %366 = arith.truncf %364 : vector<8x32xf32> to vector<8x32xbf16>
    %cst_68 = arith.constant dense<0.000000e+00> : vector<8x96xf32>
    %367 = tpu.matmul %366, %215, %cst_68 {dimension_numbers = #tpu.dot_dimension_numbers<[1], [0], [0], [1], [0, 0, 1, 1], [], []>} : vector<8x32xbf16>, vector<32x96xbf16>, vector<8x96xf32> -> vector<8x96xf32>
    %368 = vector.extract_strided_slice %365 {offsets = [0, 0], sizes = [8, 64], strides = [1, 1]} : vector<8x96xf32> to vector<8x64xf32>
    %369 = vector.extract_strided_slice %367 {offsets = [0, 0], sizes = [8, 64], strides = [1, 1]} : vector<8x96xf32> to vector<8x64xf32>
    %370 = arith.addf %368, %369 : vector<8x64xf32>
    %371 = arith.negf %370 : vector<8x64xf32>
    %372 = math.exp %371 : vector<8x64xf32>
    %cst_69 = arith.constant 1.000000e+00 : f32
    %373 = vector.broadcast %cst_69 : f32 to vector<8x64xf32>
    %374 = arith.addf %373, %372 : vector<8x64xf32>
    %375 = arith.divf %373, %374 : vector<8x64xf32>
    %376 = vector.extract_strided_slice %375 {offsets = [0, 0], sizes = [8, 32], strides = [1, 1]} : vector<8x64xf32> to vector<8x32xf32>
    %377 = vector.extract_strided_slice %375 {offsets = [0, 32], sizes = [8, 32], strides = [1, 1]} : vector<8x64xf32> to vector<8x32xf32>
    %378 = vector.extract_strided_slice %365 {offsets = [0, 64], sizes = [8, 32], strides = [1, 1]} : vector<8x96xf32> to vector<8x32xf32>
    %379 = vector.extract_strided_slice %367 {offsets = [0, 64], sizes = [8, 32], strides = [1, 1]} : vector<8x96xf32> to vector<8x32xf32>
    %380 = arith.addf %379, %218 : vector<8x32xf32>
    %381 = arith.mulf %376, %380 : vector<8x32xf32>
    %382 = arith.addf %378, %381 : vector<8x32xf32>
    %383 = math.tanh %382 : vector<8x32xf32>
    %cst_70 = arith.constant 1.000000e+00 : f32
    %384 = vector.broadcast %cst_70 : f32 to vector<8x32xf32>
    %385 = arith.subf %384, %377 : vector<8x32xf32>
    %386 = arith.mulf %385, %383 : vector<8x32xf32>
    %387 = arith.mulf %377, %364 : vector<8x32xf32>
    %388 = arith.addf %386, %387 : vector<8x32xf32>
    %389 = vector.extract_strided_slice %214 {offsets = [56, 0], sizes = [8, 96], strides = [1, 1]} : vector<64x96xf32> to vector<8x96xf32>
    %390 = arith.truncf %388 : vector<8x32xf32> to vector<8x32xbf16>
    %cst_71 = arith.constant dense<0.000000e+00> : vector<8x96xf32>
    %391 = tpu.matmul %390, %215, %cst_71 {dimension_numbers = #tpu.dot_dimension_numbers<[1], [0], [0], [1], [0, 0, 1, 1], [], []>} : vector<8x32xbf16>, vector<32x96xbf16>, vector<8x96xf32> -> vector<8x96xf32>
    %392 = vector.extract_strided_slice %389 {offsets = [0, 0], sizes = [8, 64], strides = [1, 1]} : vector<8x96xf32> to vector<8x64xf32>
    %393 = vector.extract_strided_slice %391 {offsets = [0, 0], sizes = [8, 64], strides = [1, 1]} : vector<8x96xf32> to vector<8x64xf32>
    %394 = arith.addf %392, %393 : vector<8x64xf32>
    %395 = arith.negf %394 : vector<8x64xf32>
    %396 = math.exp %395 : vector<8x64xf32>
    %cst_72 = arith.constant 1.000000e+00 : f32
    %397 = vector.broadcast %cst_72 : f32 to vector<8x64xf32>
    %398 = arith.addf %397, %396 : vector<8x64xf32>
    %399 = arith.divf %397, %398 : vector<8x64xf32>
    %400 = vector.extract_strided_slice %399 {offsets = [0, 0], sizes = [8, 32], strides = [1, 1]} : vector<8x64xf32> to vector<8x32xf32>
    %401 = vector.extract_strided_slice %399 {offsets = [0, 32], sizes = [8, 32], strides = [1, 1]} : vector<8x64xf32> to vector<8x32xf32>
    %402 = vector.extract_strided_slice %389 {offsets = [0, 64], sizes = [8, 32], strides = [1, 1]} : vector<8x96xf32> to vector<8x32xf32>
    %403 = vector.extract_strided_slice %391 {offsets = [0, 64], sizes = [8, 32], strides = [1, 1]} : vector<8x96xf32> to vector<8x32xf32>
    %404 = arith.addf %403, %218 : vector<8x32xf32>
    %405 = arith.mulf %400, %404 : vector<8x32xf32>
    %406 = arith.addf %402, %405 : vector<8x32xf32>
    %407 = math.tanh %406 : vector<8x32xf32>
    %cst_73 = arith.constant 1.000000e+00 : f32
    %408 = vector.broadcast %cst_73 : f32 to vector<8x32xf32>
    %409 = arith.subf %408, %401 : vector<8x32xf32>
    %410 = arith.mulf %409, %407 : vector<8x32xf32>
    %411 = arith.mulf %401, %388 : vector<8x32xf32>
    %412 = arith.addf %410, %411 : vector<8x32xf32>
    %c1_74 = arith.constant 1 : index
    %c0_75 = arith.constant 0 : index
    %c0_76 = arith.constant 0 : index
    %413 = vector.load %arg13[%c1_74, %c0_75, %c0_76] : memref<2x8x32xf32, #tpu.memory_space<vmem>>, vector<1x8x32xf32>
    %414 = vector.shape_cast %413 : vector<1x8x32xf32> to vector<8x32xf32>
    %415 = vector.shape_cast %412 : vector<8x32xf32> to vector<1x8x32xf32>
    tpu.vector_store %arg13[%c1_74, %c0_75, %c0_76], %415 {strides = array<i32>} : memref<2x8x32xf32, #tpu.memory_space<vmem>>, vector<1x8x32xf32>,
    %cst_77 = arith.constant 0.000000e+00 : f32
    %416 = vector.broadcast %cst_77 : f32 to vector<8x32xf32>
    %417 = arith.maximumf %412, %416 : vector<8x32xf32>
    %418 = arith.truncf %417 : vector<8x32xf32> to vector<8x32xbf16>
    %c0_78 = arith.constant 0 : index
    %c0_79 = arith.constant 0 : index
    %419 = vector.load %arg10[%c0_78, %c0_79] : memref<32x4xbf16, #tpu.memory_space<vmem>>, vector<32x4xbf16>
    %cst_80 = arith.constant dense<0.000000e+00> : vector<8x4xf32>
    %420 = tpu.matmul %418, %419, %cst_80 {dimension_numbers = #tpu.dot_dimension_numbers<[1], [0], [0], [1], [0, 0, 1, 1], [], []>} : vector<8x32xbf16>, vector<32x4xbf16>, vector<8x4xf32> -> vector<8x4xf32>
    %c0_81 = arith.constant 0 : index
    %c0_82 = arith.constant 0 : index
    %421 = vector.load %arg11[%c0_81, %c0_82] : memref<1x4xf32, #tpu.memory_space<vmem>>, vector<1x4xf32>
    %422 = vector.broadcast %421 : vector<1x4xf32> to vector<8x4xf32>
    %423 = arith.addf %420, %422 : vector<8x4xf32>
    %c0_83 = arith.constant 0 : index
    %c0_84 = arith.constant 0 : index
    %424 = vector.load %arg12[%c0_83, %c0_84] : memref<8x4xf32, #tpu.memory_space<vmem>>, vector<8x4xf32>
    tpu.vector_store %arg12[%c0_83, %c0_84], %423 {strides = array<i32>} : memref<8x4xf32, #tpu.memory_space<vmem>>, vector<8x4xf32>,
    return
  }
}

</mosaic_0001>

<llo_original>
// kernel: gru_model_forward.1
$region0: #{gru_model_forward.1}
  #allocation0 [shape = 'u32[]', space=smem, size = 0x4, offset = 0x4, fixed_abs, tag = 'smem constant byte address 0x4 - core index']
  #allocation1 [shape = 'u32[144,128]{1,0:T(1,128)}', space=vmem, size = 0x12000, scoped, tag = 'internal scratch']
  %s0 = inlined_call_operand.vmem [shape: f32[64,8], index: 0, kind: input, shape index: {}]
  %s1 = inlined_call_operand.vmem [shape: f32[2,8,32], index: 1, kind: input, shape index: {}, may-alias: {1,13}]
  %s2 = inlined_call_operand.vmem [shape: bf16[8,96], index: 2, kind: input, shape index: {}]
  %s3 = inlined_call_operand.vmem [shape: bf16[32,96], index: 3, kind: input, shape index: {}]
  %s4 = inlined_call_operand.vmem [shape: f32[1,96], index: 4, kind: input, shape index: {}]
  %s5 = inlined_call_operand.vmem [shape: f32[1,32], index: 5, kind: input, shape index: {}]
  %s6 = inlined_call_operand.vmem [shape: bf16[32,96], index: 6, kind: input, shape index: {}]
  %s7 = inlined_call_operand.vmem [shape: bf16[32,96], index: 7, kind: input, shape index: {}]
  %s8 = inlined_call_operand.vmem [shape: f32[1,96], index: 8, kind: input, shape index: {}]
  %s9 = inlined_call_operand.vmem [shape: f32[1,32], index: 9, kind: input, shape index: {}]
  %s10 = inlined_call_operand.vmem [shape: bf16[32,4], index: 10, kind: input, shape index: {}]
  %s11 = inlined_call_operand.vmem [shape: f32[1,4], index: 11, kind: input, shape index: {}]
  %s12 = inlined_call_operand.vmem [shape: f32[8,4], index: 12, kind: output, shape index: {0}]
  %s13 = inlined_call_operand.vmem [shape: f32[2,8,32], index: 13, kind: output, shape index: {1}, may-alias: {1,13}]
  %14 = xla_tuple %s12, %s13
  %s15 = sld [smem:[#allocation0]]
  $region66: #{gru_model_forward.1} parent=0
    _
  %s17 = ssub.s32 1, %s15
  %s18 = scalar_select 0, %s17, %s15
  // Predicated region
  $region2: #{gru_model_forward.1} parent=0 // pred_check
    _
  $region3: #{gru_model_forward.1} parent=0 // pred_check_branch
    %20 = sbr.rel (0) target = $region5
  $region4: #{gru_model_forward.1} parent=0 // pred_region
    _
  $region5: #{gru_model_forward.1} parent=0 // pred_fallthru
    _
  // Predicated region
  $region6: #{gru_model_forward.1} parent=0 // pred_check
    _
  $region7: #{gru_model_forward.1} parent=0 // pred_check_branch
    %22 = sbr.rel (0) target = $region9
  $region8: #{gru_model_forward.1} parent=0 // pred_region
    _
  $region9: #{gru_model_forward.1} parent=0 // pred_fallthru
    _
  // Predicated region
  $region10: #{gru_model_forward.1} parent=0 // pred_check
    _
  $region11: #{gru_model_forward.1} parent=0 // pred_check_branch
    %24 = sbr.rel (0) target = $region13
  $region12: #{gru_model_forward.1} parent=0 // pred_region
    _
  $region13: #{gru_model_forward.1} parent=0 // pred_fallthru
    _
  // Predicated region
  $region14: #{gru_model_forward.1} parent=0 // pred_check
    _
  $region15: #{gru_model_forward.1} parent=0 // pred_check_branch
    %26 = sbr.rel (0) target = $region17
  $region16: #{gru_model_forward.1} parent=0 // pred_region
    _
  $region17: #{gru_model_forward.1} parent=0 // pred_fallthru
    _
  // Predicated region
  $region18: #{gru_model_forward.1} parent=0 // pred_check
    _
  $region19: #{gru_model_forward.1} parent=0 // pred_check_branch
    %28 = sbr.rel (0) target = $region21
  $region20: #{gru_model_forward.1} parent=0 // pred_region
    _
  $region21: #{gru_model_forward.1} parent=0 // pred_fallthru
    _
  // Predicated region
  $region22: #{gru_model_forward.1} parent=0 // pred_check
    _
  $region23: #{gru_model_forward.1} parent=0 // pred_check_branch
    %30 = sbr.rel (0) target = $region25
  $region24: #{gru_model_forward.1} parent=0 // pred_region
    _
  $region25: #{gru_model_forward.1} parent=0 // pred_fallthru
    _
  // Predicated region
  $region26: #{gru_model_forward.1} parent=0 // pred_check
    _
  $region27: #{gru_model_forward.1} parent=0 // pred_check_branch
    %32 = sbr.rel (0) target = $region29
  $region28: #{gru_model_forward.1} parent=0 // pred_region
    _
  $region29: #{gru_model_forward.1} parent=0 // pred_fallthru
    _
  // Predicated region
  $region30: #{gru_model_forward.1} parent=0 // pred_check
    _
  $region31: #{gru_model_forward.1} parent=0 // pred_check_branch
    %34 = sbr.rel (0) target = $region33
  $region32: #{gru_model_forward.1} parent=0 // pred_region
    _
  $region33: #{gru_model_forward.1} parent=0 // pred_fallthru
    _
  // Predicated region
  $region34: #{gru_model_forward.1} parent=0 // pred_check
    _
  $region35: #{gru_model_forward.1} parent=0 // pred_check_branch
    %36 = sbr.rel (0) target = $region37
  $region36: #{gru_model_forward.1} parent=0 // pred_region
    _
  $region37: #{gru_model_forward.1} parent=0 // pred_fallthru
    _
  // Predicated region
  $region38: #{gru_model_forward.1} parent=0 // pred_check
    _
  $region39: #{gru_model_forward.1} parent=0 // pred_check_branch
    %38 = sbr.rel (0) target = $region41
  $region40: #{gru_model_forward.1} parent=0 // pred_region
    _
  $region41: #{gru_model_forward.1} parent=0 // pred_fallthru
    _
  // Predicated region
  $region42: #{gru_model_forward.1} parent=0 // pred_check
    _
  $region43: #{gru_model_forward.1} parent=0 // pred_check_branch
    %40 = sbr.rel (0) target = $region45
  $region44: #{gru_model_forward.1} parent=0 // pred_region
    _
  $region45: #{gru_model_forward.1} parent=0 // pred_fallthru
    _
  // Predicated region
  $region46: #{gru_model_forward.1} parent=0 // pred_check
    _
  $region47: #{gru_model_forward.1} parent=0 // pred_check_branch
    %42 = sbr.rel (0) target = $region49
  $region48: #{gru_model_forward.1} parent=0 // pred_region
    _
  $region49: #{gru_model_forward.1} parent=0 // pred_fallthru
    _
  %v44 = vld [vmem:[%s0] sm:$0xff]
  %v45 = vld [vmem:[%s0 + $0x8] sm:$0xff]
  %v46 = vld [vmem:[%s0 + $0x10] sm:$0xff]
  %v47 = vld [vmem:[%s0 + $0x18] sm:$0xff]
  %v48 = vld [vmem:[%s0 + $0x20] sm:$0xff]
  %v49 = vld [vmem:[%s0 + $0x28] sm:$0xff]
  %v50 = vld [vmem:[%s0 + $0x30] sm:$0xff]
  %v51 = vld [vmem:[%s0 + $0x38] sm:$0xff]
  %v52 = vpack.c.bf16 %v45, %v44
  %v53 = vpack.c.bf16 %v47, %v46
  %v54 = vpack.c.bf16 %v49, %v48
  %v55 = vpack.c.bf16 %v51, %v50
  %v56 = vld [vmem:[%s2] sm:$0xf]
  %v57 = vld [vmem:[%s4] sm:$0x1]
  %v59 = vlaneseq
  %v60 = vshrl.u32 %v59, 7
  %v61 = vsub.s32 0, %v60
  %v62 = vrot.slane %v57, %v61
  %vm64 = vcmask 64512
  %v66 = vsel %vm64, %v52, 0
  %v69 = vsel %vm64, %v53, 0
  %v72 = vsel %vm64, %v54, 0
  %v75 = vsel %vm64, %v55, 0
  %vm77 = vcmask 1043456
  %v79 = vsel %vm77, %v56, 0
  %81 = vmatprep.subr.bf16.mxu0 0
  %82 = vmatpush1.bf16.msra.mxu0 %v79
  %83 = vmatprep.subr.bf16.mxu0 0
  %84 = vmatpush1.bf16.msra.mxu0 0
  %85 = vmatprep.subr.bf16.mxu0 0
  %86 = vmatpush1.bf16.msra.mxu0 0
  %87 = vmatprep.subr.bf16.mxu0 0
  %88 = vmatpush1.bf16.msra.mxu0 0
  %89 = vmatprep.subr.bf16.mxu0 0
  %90 = vmatpush1.bf16.msra.mxu0 0
  %91 = vmatprep.subr.bf16.mxu0 0
  %92 = vmatpush1.bf16.msra.mxu0 0
  %93 = vmatprep.subr.bf16.mxu0 0
  %94 = vmatpush1.bf16.msra.mxu0 0
  %95 = vmatprep.subr.bf16.mxu0 0
  %96 = vmatpush1.bf16.msra.mxu0 0
  %97 = vmatprep.subr.bf16.mxu0 0
  %98 = vmatpush1.bf16.msra.mxu0 0
  %99 = vmatprep.subr.bf16.mxu0 0
  %100 = vmatpush1.bf16.msra.mxu0 0
  %101 = vmatprep.subr.bf16.mxu0 0
  %102 = vmatpush1.bf16.msra.mxu0 0
  %103 = vmatprep.subr.bf16.mxu0 0
  %104 = vmatpush1.bf16.msra.mxu0 0
  %105 = vmatprep.subr.bf16.mxu0 0
  %106 = vmatpush1.bf16.msra.mxu0 0
  %107 = vmatprep.subr.bf16.mxu0 0
  %108 = vmatpush1.bf16.msra.mxu0 0
  %109 = vmatprep.subr.bf16.mxu0 0
  %110 = vmatpush1.bf16.msra.mxu0 0
  %111 = vmatprep.subr.bf16.mxu0 0
  %112 = vmatpush1.bf16.msra.mxu0 0
  %113 = vmatprep.mubr.bf16.mxu0 0
  %114 = vmatmul.mubr.bf16.gmra.mrb[0].mxu0 %v66
  %v115 = vpop.f32.mrb[0].mxu0
  %v116 = vadd.f32 %v62, %v115
  %v117 = vpop.f32.mrb[0].mxu0
  %v118 = vpop.f32.mrb[0].mxu0
  %v119 = vadd.f32 %v62, %v118
  %v120 = vpop.f32.mrb[0].mxu0
  %121 = vmatprep.mubr.bf16.mxu0 0
  %122 = vmatmul.mubr.bf16.gmra.mrb[0].mxu0 %v69
  %v123 = vpop.f32.mrb[0].mxu0
  %v124 = vadd.f32 %v62, %v123
  %v125 = vpop.f32.mrb[0].mxu0
  %v126 = vpop.f32.mrb[0].mxu0
  %v127 = vadd.f32 %v62, %v126
  %v128 = vpop.f32.mrb[0].mxu0
  %129 = vmatprep.mubr.bf16.mxu0 0
  %130 = vmatmul.mubr.bf16.gmra.mrb[0].mxu0 %v72
  %v131 = vpop.f32.mrb[0].mxu0
  %v132 = vadd.f32 %v62, %v131
  %v133 = vpop.f32.mrb[0].mxu0
  %v134 = vpop.f32.mrb[0].mxu0
  %v135 = vadd.f32 %v62, %v134
  %v136 = vpop.f32.mrb[0].mxu0
  %137 = vmatprep.mubr.bf16.mxu0 0
  %138 = vmatmul.mubr.bf16.gmra.mrb[0].mxu0 %v75
  %v139 = vpop.f32.mrb[0].mxu0
  %v140 = vadd.f32 %v62, %v139
  %v141 = vpop.f32.mrb[0].mxu0
  %v142 = vpop.f32.mrb[0].mxu0
  %v143 = vadd.f32 %v62, %v142
  %v144 = vpop.f32.mrb[0].mxu0
  %145 = vdwg.mxu0
  %v146 = vld [vmem:[%s3] sm:$0xf]
  %v147 = vld [vmem:[%s3 + $0x4] sm:$0xf]
  %v148 = vld [vmem:[%s3 + $0x8] sm:$0xf]
  %v149 = vld [vmem:[%s3 + $0xc] sm:$0xf]
  %v150 = vld [vmem:[%s5] sm:$0x1]
  %v152 = vlaneseq
  %v153 = vshrl.u32 %v152, 7
  %v154 = vsub.s32 0, %v153
  %v155 = vrot.slane %v150, %v154
  %v156 = vld [vmem:[%s1] sm:$0xff]
  %v157 = vpack.c.bf16 %v156, %v156
  %v162 = vunpack.c.l.b16 %v146
  %v163 = vunpack.c.l.b16 %v147
  %v164 = vunpack.c.l.b16 %v148
  %v165 = vunpack.c.l.b16 %v149
  %v166 = vpack.c.b16 %v163, %v162
  %v167 = vpack.c.b16 %v165, %v164
  %vm170 = vcmask 261120
  %v172 = vsel %vm170, %v157, 0
  %174 = vmatprep.subr.bf16.mxu0 0
  %175 = vmatpush1.bf16.msra.mxu0 %v166
  %176 = vmatprep.subr.bf16.mxu0 0
  %177 = vmatpush1.bf16.msra.mxu0 %v167
  %178 = vmatprep.subr.bf16.mxu0 0
  %179 = vmatpush1.bf16.msra.mxu0 0
  %180 = vmatprep.subr.bf16.mxu0 0
  %181 = vmatpush1.bf16.msra.mxu0 0
  %182 = vmatprep.subr.bf16.mxu0 0
  %183 = vmatpush1.bf16.msra.mxu0 0
  %184 = vmatprep.subr.bf16.mxu0 0
  %185 = vmatpush1.bf16.msra.mxu0 0
  %186 = vmatprep.subr.bf16.mxu0 0
  %187 = vmatpush1.bf16.msra.mxu0 0
  %188 = vmatprep.subr.bf16.mxu0 0
  %189 = vmatpush1.bf16.msra.mxu0 0
  %190 = vmatprep.subr.bf16.mxu0 0
  %191 = vmatpush1.bf16.msra.mxu0 0
  %192 = vmatprep.subr.bf16.mxu0 0
  %193 = vmatpush1.bf16.msra.mxu0 0
  %194 = vmatprep.subr.bf16.mxu0 0
  %195 = vmatpush1.bf16.msra.mxu0 0
  %196 = vmatprep.subr.bf16.mxu0 0
  %197 = vmatpush1.bf16.msra.mxu0 0
  %198 = vmatprep.subr.bf16.mxu0 0
  %199 = vmatpush1.bf16.msra.mxu0 0
  %200 = vmatprep.subr.bf16.mxu0 0
  %201 = vmatpush1.bf16.msra.mxu0 0
  %202 = vmatprep.subr.bf16.mxu0 0
  %203 = vmatpush1.bf16.msra.mxu0 0
  %204 = vmatprep.subr.bf16.mxu0 0
  %205 = vmatpush1.bf16.msra.mxu0 0
  %206 = vmatprep.mubr.bf16.mxu0 0
  %207 = vmatmul.mubr.bf16.gmra.mrb[0].mxu0 %v172
  %v208 = vpop.f32.mrb[0].mxu0
  %v209 = vadd.f32 0.0, %v208
  %v210 = vpop.f32.mrb[0].mxu0
  %v211 = vpop.f32.mrb[0].mxu0
  %v212 = vpop.f32.mrb[0].mxu0
  %213 = vdwg.mxu0
  %v214 = vadd.f32 %v116, %v209
  %v215 = vxor.u32 %v214, 2147483648
  %v216 = vmul.f32 %v215, 1.442695
  %v217 = vpow.pop %v216
  %v218 = vadd.f32 %v217, 1.0
  %v219 = vrcp.pop %v218
  %v220 = vmul.f32 1.0, %v219
  %221 = vrot.lane.b32.xlu0 %v155, 64
  %v222 = vpop.permute.xlu0 %221
  %v224 = vadd.f32 %v209, %v222
  %226 = vrot.lane.b32.xlu0 %v224, 64
  %v227 = vpop.permute.xlu0 %226
  %v229 = vmul.f32 %v220, %v227
  %231 = vrot.lane.b32.xlu0 %v229, 64
  %v232 = vpop.permute.xlu0 %231
  %v234 = vadd.f32 %v116, %v232
  %v235 = vtanh.pop %v234
  %v236 = vsub.f32 1.0, %v220
  %238 = vrot.lane.b32.xlu0 %v235, 96
  %v239 = vpop.permute.xlu0 %238
  %v241 = vmul.f32 %v236, %v239
  %243 = vrot.lane.b32.xlu0 %v156, 32
  %v244 = vpop.permute.xlu0 %243
  %v246 = vmul.f32 %v220, %v244
  %v247 = vadd.f32 %v241, %v246
  %v248 = vpack.c.bf16 %v247, %v247
  %250 = vrot.lane.b32.xlu0 %v248, 96
  %v251 = vpop.permute.xlu0 %250
  %v253 = vsel %vm170, %v251, 0
  %255 = vmatprep.subr.bf16.mxu0 0
  %256 = vmatpush1.bf16.msra.mxu0 %v166
  %257 = vmatprep.subr.bf16.mxu0 0
  %258 = vmatpush1.bf16.msra.mxu0 %v167
  %259 = vmatprep.subr.bf16.mxu0 0
  %260 = vmatpush1.bf16.msra.mxu0 0
  %261 = vmatprep.subr.bf16.mxu0 0
  %262 = vmatpush1.bf16.msra.mxu0 0
  %263 = vmatprep.subr.bf16.mxu0 0
  %264 = vmatpush1.bf16.msra.mxu0 0
  %265 = vmatprep.subr.bf16.mxu0 0
  %266 = vmatpush1.bf16.msra.mxu0 0
  %267 = vmatprep.subr.bf16.mxu0 0
  %268 = vmatpush1.bf16.msra.mxu0 0
  %269 = vmatprep.subr.bf16.mxu0 0
  %270 = vmatpush1.bf16.msra.mxu0 0
  %271 = vmatprep.subr.bf16.mxu0 0
  %272 = vmatpush1.bf16.msra.mxu0 0
  %273 = vmatprep.subr.bf16.mxu0 0
  %274 = vmatpush1.bf16.msra.mxu0 0
  %275 = vmatprep.subr.bf16.mxu0 0
  %276 = vmatpush1.bf16.msra.mxu0 0
  %277 = vmatprep.subr.bf16.mxu0 0
  %278 = vmatpush1.bf16.msra.mxu0 0
  %279 = vmatprep.subr.bf16.mxu0 0
  %280 = vmatpush1.bf16.msra.mxu0 0
  %281 = vmatprep.subr.bf16.mxu0 0
  %282 = vmatpush1.bf16.msra.mxu0 0
  %283 = vmatprep.subr.bf16.mxu0 0
  %284 = vmatpush1.bf16.msra.mxu0 0
  %285 = vmatprep.subr.bf16.mxu0 0
  %286 = vmatpush1.bf16.msra.mxu0 0
  %287 = vmatprep.mubr.bf16.mxu0 0
  %288 = vmatmul.mubr.bf16.gmra.mrb[0].mxu0 %v253
  %v289 = vpop.f32.mrb[0].mxu0
  %v290 = vadd.f32 0.0, %v289
  %v291 = vpop.f32.mrb[0].mxu0
  %v292 = vpop.f32.mrb[0].mxu0
  %v293 = vpop.f32.mrb[0].mxu0
  %294 = vdwg.mxu0
  %v295 = vadd.f32 %v119, %v290
  %v296 = vxor.u32 %v295, 2147483648
  %v297 = vmul.f32 %v296, 1.442695
  %v298 = vpow.pop %v297
  %v299 = vadd.f32 %v298, 1.0
  %v300 = vrcp.pop %v299
  %v301 = vmul.f32 1.0, %v300
  %v302 = vadd.f32 %v290, %v222
  %304 = vrot.lane.b32.xlu0 %v302, 64
  %v305 = vpop.permute.xlu0 %304
  %v307 = vmul.f32 %v301, %v305
  %309 = vrot.lane.b32.xlu0 %v307, 64
  %v310 = vpop.permute.xlu0 %309
  %v312 = vadd.f32 %v119, %v310
  %v313 = vtanh.pop %v312
  %v314 = vsub.f32 1.0, %v301
  %316 = vrot.lane.b32.xlu0 %v313, 96
  %v317 = vpop.permute.xlu0 %316
  %v319 = vmul.f32 %v314, %v317
  %v320 = vmul.f32 %v301, %v247
  %v321 = vadd.f32 %v319, %v320
  %v322 = vpack.c.bf16 %v321, %v321
  %324 = vrot.lane.b32.xlu0 %v322, 96
  %v325 = vpop.permute.xlu0 %324
  %v327 = vsel %vm170, %v325, 0
  %329 = vmatprep.subr.bf16.mxu0 0
  %330 = vmatpush1.bf16.msra.mxu0 %v166
  %331 = vmatprep.subr.bf16.mxu0 0
  %332 = vmatpush1.bf16.msra.mxu0 %v167
  %333 = vmatprep.subr.bf16.mxu0 0
  %334 = vmatpush1.bf16.msra.mxu0 0
  %335 = vmatprep.subr.bf16.mxu0 0
  %336 = vmatpush1.bf16.msra.mxu0 0
  %337 = vmatprep.subr.bf16.mxu0 0
  %338 = vmatpush1.bf16.msra.mxu0 0
  %339 = vmatprep.subr.bf16.mxu0 0
  %340 = vmatpush1.bf16.msra.mxu0 0
  %341 = vmatprep.subr.bf16.mxu0 0
  %342 = vmatpush1.bf16.msra.mxu0 0
  %343 = vmatprep.subr.bf16.mxu0 0
  %344 = vmatpush1.bf16.msra.mxu0 0
  %345 = vmatprep.subr.bf16.mxu0 0
  %346 = vmatpush1.bf16.msra.mxu0 0
  %347 = vmatprep.subr.bf16.mxu0 0
  %348 = vmatpush1.bf16.msra.mxu0 0
  %349 = vmatprep.subr.bf16.mxu0 0
  %350 = vmatpush1.bf16.msra.mxu0 0
  %351 = vmatprep.subr.bf16.mxu0 0
  %352 = vmatpush1.bf16.msra.mxu0 0
  %353 = vmatprep.subr.bf16.mxu0 0
  %354 = vmatpush1.bf16.msra.mxu0 0
  %355 = vmatprep.subr.bf16.mxu0 0
  %356 = vmatpush1.bf16.msra.mxu0 0
  %357 = vmatprep.subr.bf16.mxu0 0
  %358 = vmatpush1.bf16.msra.mxu0 0
  %359 = vmatprep.subr.bf16.mxu0 0
  %360 = vmatpush1.bf16.msra.mxu0 0
  %361 = vmatprep.mubr.bf16.mxu0 0
  %362 = vmatmul.mubr.bf16.gmra.mrb[0].mxu0 %v327
  %v363 = vpop.f32.mrb[0].mxu0
  %v364 = vadd.f32 0.0, %v363
  %v365 = vpop.f32.mrb[0].mxu0
  %v366 = vpop.f32.mrb[0].mxu0
  %v367 = vpop.f32.mrb[0].mxu0
  %368 = vdwg.mxu0
  %v369 = vadd.f32 %v124, %v364
  %v370 = vxor.u32 %v369, 2147483648
  %v371 = vmul.f32 %v370, 1.442695
  %v372 = vpow.pop %v371
  %v373 = vadd.f32 %v372, 1.0
  %v374 = vrcp.pop %v373
  %v375 = vmul.f32 1.0, %v374
  %v376 = vadd.f32 %v364, %v222
  %378 = vrot.lane.b32.xlu0 %v376, 64
  %v379 = vpop.permute.xlu0 %378
  %v381 = vmul.f32 %v375, %v379
  %383 = vrot.lane.b32.xlu0 %v381, 64
  %v384 = vpop.permute.xlu0 %383
  %v386 = vadd.f32 %v124, %v384
  %v387 = vtanh.pop %v386
  %v388 = vsub.f32 1.0, %v375
  %390 = vrot.lane.b32.xlu0 %v387, 96
  %v391 = vpop.permute.xlu0 %390
  %v393 = vmul.f32 %v388, %v391
  %v394 = vmul.f32 %v375, %v321
  %v395 = vadd.f32 %v393, %v394
  %v396 = vpack.c.bf16 %v395, %v395
  %398 = vrot.lane.b32.xlu0 %v396, 96
  %v399 = vpop.permute.xlu0 %398
  %v401 = vsel %vm170, %v399, 0
  %403 = vmatprep.subr.bf16.mxu0 0
  %404 = vmatpush1.bf16.msra.mxu0 %v166
  %405 = vmatprep.subr.bf16.mxu0 0
  %406 = vmatpush1.bf16.msra.mxu0 %v167
  %407 = vmatprep.subr.bf16.mxu0 0
  %408 = vmatpush1.bf16.msra.mxu0 0
  %409 = vmatprep.subr.bf16.mxu0 0
  %410 = vmatpush1.bf16.msra.mxu0 0
  %411 = vmatprep.subr.bf16.mxu0 0
  %412 = vmatpush1.bf16.msra.mxu0 0
  %413 = vmatprep.subr.bf16.mxu0 0
  %414 = vmatpush1.bf16.msra.mxu0 0
  %415 = vmatprep.subr.bf16.mxu0 0
  %416 = vmatpush1.bf16.msra.mxu0 0
  %417 = vmatprep.subr.bf16.mxu0 0
  %418 = vmatpush1.bf16.msra.mxu0 0
  %419 = vmatprep.subr.bf16.mxu0 0
  %420 = vmatpush1.bf16.msra.mxu0 0
  %421 = vmatprep.subr.bf16.mxu0 0
  %422 = vmatpush1.bf16.msra.mxu0 0
  %423 = vmatprep.subr.bf16.mxu0 0
  %424 = vmatpush1.bf16.msra.mxu0 0
  %425 = vmatprep.subr.bf16.mxu0 0
  %426 = vmatpush1.bf16.msra.mxu0 0
  %427 = vmatprep.subr.bf16.mxu0 0
  %428 = vmatpush1.bf16.msra.mxu0 0
  %429 = vmatprep.subr.bf16.mxu0 0
  %430 = vmatpush1.bf16.msra.mxu0 0
  %431 = vmatprep.subr.bf16.mxu0 0
  %432 = vmatpush1.bf16.msra.mxu0 0
  %433 = vmatprep.subr.bf16.mxu0 0
  %434 = vmatpush1.bf16.msra.mxu0 0
  %435 = vmatprep.mubr.bf16.mxu0 0
  %436 = vmatmul.mubr.bf16.gmra.mrb[0].mxu0 %v401
  %v437 = vpop.f32.mrb[0].mxu0
  %v438 = vadd.f32 0.0, %v437
  %v439 = vpop.f32.mrb[0].mxu0
  %v440 = vpop.f32.mrb[0].mxu0
  %v441 = vpop.f32.mrb[0].mxu0
  %442 = vdwg.mxu0
  %v443 = vadd.f32 %v127, %v438
  %v444 = vxor.u32 %v443, 2147483648
  %v445 = vmul.f32 %v444, 1.442695
  %v446 = vpow.pop %v445
  %v447 = vadd.f32 %v446, 1.0
  %v448 = vrcp.pop %v447
  %v449 = vmul.f32 1.0, %v448
  %v450 = vadd.f32 %v438, %v222
  %452 = vrot.lane.b32.xlu0 %v450, 64
  %v453 = vpop.permute.xlu0 %452
  %v455 = vmul.f32 %v449, %v453
  %457 = vrot.lane.b32.xlu0 %v455, 64
  %v458 = vpop.permute.xlu0 %457
  %v460 = vadd.f32 %v127, %v458
  %v461 = vtanh.pop %v460
  %v462 = vsub.f32 1.0, %v449
  %464 = vrot.lane.b32.xlu0 %v461, 96
  %v465 = vpop.permute.xlu0 %464
  %v467 = vmul.f32 %v462, %v465
  %v468 = vmul.f32 %v449, %v395
  %v469 = vadd.f32 %v467, %v468
  %v470 = vpack.c.bf16 %v469, %v469
  %472 = vrot.lane.b32.xlu0 %v470, 96
  %v473 = vpop.permute.xlu0 %472
  %v475 = vsel %vm170, %v473, 0
  %477 = vmatprep.subr.bf16.mxu0 0
  %478 = vmatpush1.bf16.msra.mxu0 %v166
  %479 = vmatprep.subr.bf16.mxu0 0
  %480 = vmatpush1.bf16.msra.mxu0 %v167
  %481 = vmatprep.subr.bf16.mxu0 0
  %482 = vmatpush1.bf16.msra.mxu0 0
  %483 = vmatprep.subr.bf16.mxu0 0
  %484 = vmatpush1.bf16.msra.mxu0 0
  %485 = vmatprep.subr.bf16.mxu0 0
  %486 = vmatpush1.bf16.msra.mxu0 0
  %487 = vmatprep.subr.bf16.mxu0 0
  %488 = vmatpush1.bf16.msra.mxu0 0
  %489 = vmatprep.subr.bf16.mxu0 0
  %490 = vmatpush1.bf16.msra.mxu0 0
  %491 = vmatprep.subr.bf16.mxu0 0
  %492 = vmatpush1.bf16.msra.mxu0 0
  %493 = vmatprep.subr.bf16.mxu0 0
  %494 = vmatpush1.bf16.msra.mxu0 0
  %495 = vmatprep.subr.bf16.mxu0 0
  %496 = vmatpush1.bf16.msra.mxu0 0
  %497 = vmatprep.subr.bf16.mxu0 0
  %498 = vmatpush1.bf16.msra.mxu0 0
  %499 = vmatprep.subr.bf16.mxu0 0
  %500 = vmatpush1.bf16.msra.mxu0 0
  %501 = vmatprep.subr.bf16.mxu0 0
  %502 = vmatpush1.bf16.msra.mxu0 0
  %503 = vmatprep.subr.bf16.mxu0 0
  %504 = vmatpush1.bf16.msra.mxu0 0
  %505 = vmatprep.subr.bf16.mxu0 0
  %506 = vmatpush1.bf16.msra.mxu0 0
  %507 = vmatprep.subr.bf16.mxu0 0
  %508 = vmatpush1.bf16.msra.mxu0 0
  %509 = vmatprep.mubr.bf16.mxu0 0
  %510 = vmatmul.mubr.bf16.gmra.mrb[0].mxu0 %v475
  %v511 = vpop.f32.mrb[0].mxu0
  %v512 = vadd.f32 0.0, %v511
  %v513 = vpop.f32.mrb[0].mxu0
  %v514 = vpop.f32.mrb[0].mxu0
  %v515 = vpop.f32.mrb[0].mxu0
  %516 = vdwg.mxu0
  %v517 = vadd.f32 %v132, %v512
  %v518 = vxor.u32 %v517, 2147483648
  %v519 = vmul.f32 %v518, 1.442695
  %v520 = vpow.pop %v519
  %v521 = vadd.f32 %v520, 1.0
  %v522 = vrcp.pop %v521
  %v523 = vmul.f32 1.0, %v522
  %v524 = vadd.f32 %v512, %v222
  %526 = vrot.lane.b32.xlu0 %v524, 64
  %v527 = vpop.permute.xlu0 %526
  %v529 = vmul.f32 %v523, %v527
  %531 = vrot.lane.b32.xlu0 %v529, 64
  %v532 = vpop.permute.xlu0 %531
  %v534 = vadd.f32 %v132, %v532
  %v535 = vtanh.pop %v534
  %v536 = vsub.f32 1.0, %v523
  %538 = vrot.lane.b32.xlu0 %v535, 96
  %v539 = vpop.permute.xlu0 %538
  %v541 = vmul.f32 %v536, %v539
  %v542 = vmul.f32 %v523, %v469
  %v543 = vadd.f32 %v541, %v542
  %v544 = vpack.c.bf16 %v543, %v543
  %546 = vrot.lane.b32.xlu0 %v544, 96
  %v547 = vpop.permute.xlu0 %546
  %v549 = vsel %vm170, %v547, 0
  %551 = vmatprep.subr.bf16.mxu0 0
  %552 = vmatpush1.bf16.msra.mxu0 %v166
  %553 = vmatprep.subr.bf16.mxu0 0
  %554 = vmatpush1.bf16.msra.mxu0 %v167
  %555 = vmatprep.subr.bf16.mxu0 0
  %556 = vmatpush1.bf16.msra.mxu0 0
  %557 = vmatprep.subr.bf16.mxu0 0
  %558 = vmatpush1.bf16.msra.mxu0 0
  %559 = vmatprep.subr.bf16.mxu0 0
  %560 = vmatpush1.bf16.msra.mxu0 0
  %561 = vmatprep.subr.bf16.mxu0 0
  %562 = vmatpush1.bf16.msra.mxu0 0
  %563 = vmatprep.subr.bf16.mxu0 0
  %564 = vmatpush1.bf16.msra.mxu0 0
  %565 = vmatprep.subr.bf16.mxu0 0
  %566 = vmatpush1.bf16.msra.mxu0 0
  %567 = vmatprep.subr.bf16.mxu0 0
  %568 = vmatpush1.bf16.msra.mxu0 0
  %569 = vmatprep.subr.bf16.mxu0 0
  %570 = vmatpush1.bf16.msra.mxu0 0
  %571 = vmatprep.subr.bf16.mxu0 0
  %572 = vmatpush1.bf16.msra.mxu0 0
  %573 = vmatprep.subr.bf16.mxu0 0
  %574 = vmatpush1.bf16.msra.mxu0 0
  %575 = vmatprep.subr.bf16.mxu0 0
  %576 = vmatpush1.bf16.msra.mxu0 0
  %577 = vmatprep.subr.bf16.mxu0 0
  %578 = vmatpush1.bf16.msra.mxu0 0
  %579 = vmatprep.subr.bf16.mxu0 0
  %580 = vmatpush1.bf16.msra.mxu0 0
  %581 = vmatprep.subr.bf16.mxu0 0
  %582 = vmatpush1.bf16.msra.mxu0 0
  %583 = vmatprep.mubr.bf16.mxu0 0
  %584 = vmatmul.mubr.bf16.gmra.mrb[0].mxu0 %v549
  %v585 = vpop.f32.mrb[0].mxu0
  %v586 = vadd.f32 0.0, %v585
  %v587 = vpop.f32.mrb[0].mxu0
  %v588 = vpop.f32.mrb[0].mxu0
  %v589 = vpop.f32.mrb[0].mxu0
  %590 = vdwg.mxu0
  %v591 = vadd.f32 %v135, %v586
  %v592 = vxor.u32 %v591, 2147483648
  %v593 = vmul.f32 %v592, 1.442695
  %v594 = vpow.pop %v593
  %v595 = vadd.f32 %v594, 1.0
  %v596 = vrcp.pop %v595
  %v597 = vmul.f32 1.0, %v596
  %v598 = vadd.f32 %v586, %v222
  %600 = vrot.lane.b32.xlu0 %v598, 64
  %v601 = vpop.permute.xlu0 %600
  %v603 = vmul.f32 %v597, %v601
  %605 = vrot.lane.b32.xlu0 %v603, 64
  %v606 = vpop.permute.xlu0 %605
  %v608 = vadd.f32 %v135, %v606
  %v609 = vtanh.pop %v608
  %v610 = vsub.f32 1.0, %v597
  %612 = vrot.lane.b32.xlu0 %v609, 96
  %v613 = vpop.permute.xlu0 %612
  %v615 = vmul.f32 %v610, %v613
  %v616 = vmul.f32 %v597, %v543
  %v617 = vadd.f32 %v615, %v616
  %v618 = vpack.c.bf16 %v617, %v617
  %620 = vrot.lane.b32.xlu0 %v618, 96
  %v621 = vpop.permute.xlu0 %620
  %v623 = vsel %vm170, %v621, 0
  %625 = vmatprep.subr.bf16.mxu0 0
  %626 = vmatpush1.bf16.msra.mxu0 %v166
  %627 = vmatprep.subr.bf16.mxu0 0
  %628 = vmatpush1.bf16.msra.mxu0 %v167
  %629 = vmatprep.subr.bf16.mxu0 0
  %630 = vmatpush1.bf16.msra.mxu0 0
  %631 = vmatprep.subr.bf16.mxu0 0
  %632 = vmatpush1.bf16.msra.mxu0 0
  %633 = vmatprep.subr.bf16.mxu0 0
  %634 = vmatpush1.bf16.msra.mxu0 0
  %635 = vmatprep.subr.bf16.mxu0 0
  %636 = vmatpush1.bf16.msra.mxu0 0
  %637 = vmatprep.subr.bf16.mxu0 0
  %638 = vmatpush1.bf16.msra.mxu0 0
  %639 = vmatprep.subr.bf16.mxu0 0
  %640 = vmatpush1.bf16.msra.mxu0 0
  %641 = vmatprep.subr.bf16.mxu0 0
  %642 = vmatpush1.bf16.msra.mxu0 0
  %643 = vmatprep.subr.bf16.mxu0 0
  %644 = vmatpush1.bf16.msra.mxu0 0
  %645 = vmatprep.subr.bf16.mxu0 0
  %646 = vmatpush1.bf16.msra.mxu0 0
  %647 = vmatprep.subr.bf16.mxu0 0
  %648 = vmatpush1.bf16.msra.mxu0 0
  %649 = vmatprep.subr.bf16.mxu0 0
  %650 = vmatpush1.bf16.msra.mxu0 0
  %651 = vmatprep.subr.bf16.mxu0 0
  %652 = vmatpush1.bf16.msra.mxu0 0
  %653 = vmatprep.subr.bf16.mxu0 0
  %654 = vmatpush1.bf16.msra.mxu0 0
  %655 = vmatprep.subr.bf16.mxu0 0
  %656 = vmatpush1.bf16.msra.mxu0 0
  %657 = vmatprep.mubr.bf16.mxu0 0
  %658 = vmatmul.mubr.bf16.gmra.mrb[0].mxu0 %v623
  %v659 = vpop.f32.mrb[0].mxu0
  %v660 = vadd.f32 0.0, %v659
  %v661 = vpop.f32.mrb[0].mxu0
  %v662 = vpop.f32.mrb[0].mxu0
  %v663 = vpop.f32.mrb[0].mxu0
  %664 = vdwg.mxu0
  %v665 = vadd.f32 %v140, %v660
  %v666 = vxor.u32 %v665, 2147483648
  %v667 = vmul.f32 %v666, 1.442695
  %v668 = vpow.pop %v667
  %v669 = vadd.f32 %v668, 1.0
  %v670 = vrcp.pop %v669
  %v671 = vmul.f32 1.0, %v670
  %v672 = vadd.f32 %v660, %v222
  %674 = vrot.lane.b32.xlu0 %v672, 64
  %v675 = vpop.permute.xlu0 %674
  %v677 = vmul.f32 %v671, %v675
  %679 = vrot.lane.b32.xlu0 %v677, 64
  %v680 = vpop.permute.xlu0 %679
  %v682 = vadd.f32 %v140, %v680
  %v683 = vtanh.pop %v682
  %v684 = vsub.f32 1.0, %v671
  %686 = vrot.lane.b32.xlu0 %v683, 96
  %v687 = vpop.permute.xlu0 %686
  %v689 = vmul.f32 %v684, %v687
  %v690 = vmul.f32 %v671, %v617
  %v691 = vadd.f32 %v689, %v690
  %v692 = vpack.c.bf16 %v691, %v691
  %694 = vrot.lane.b32.xlu0 %v692, 96
  %v695 = vpop.permute.xlu0 %694
  %v697 = vsel %vm170, %v695, 0
  %699 = vmatprep.subr.bf16.mxu0 0
  %700 = vmatpush1.bf16.msra.mxu0 %v166
  %701 = vmatprep.subr.bf16.mxu0 0
  %702 = vmatpush1.bf16.msra.mxu0 %v167
  %703 = vmatprep.subr.bf16.mxu0 0
  %704 = vmatpush1.bf16.msra.mxu0 0
  %705 = vmatprep.subr.bf16.mxu0 0
  %706 = vmatpush1.bf16.msra.mxu0 0
  %707 = vmatprep.subr.bf16.mxu0 0
  %708 = vmatpush1.bf16.msra.mxu0 0
  %709 = vmatprep.subr.bf16.mxu0 0
  %710 = vmatpush1.bf16.msra.mxu0 0
  %711 = vmatprep.subr.bf16.mxu0 0
  %712 = vmatpush1.bf16.msra.mxu0 0
  %713 = vmatprep.subr.bf16.mxu0 0
  %714 = vmatpush1.bf16.msra.mxu0 0
  %715 = vmatprep.subr.bf16.mxu0 0
  %716 = vmatpush1.bf16.msra.mxu0 0
  %717 = vmatprep.subr.bf16.mxu0 0
  %718 = vmatpush1.bf16.msra.mxu0 0
  %719 = vmatprep.subr.bf16.mxu0 0
  %720 = vmatpush1.bf16.msra.mxu0 0
  %721 = vmatprep.subr.bf16.mxu0 0
  %722 = vmatpush1.bf16.msra.mxu0 0
  %723 = vmatprep.subr.bf16.mxu0 0
  %724 = vmatpush1.bf16.msra.mxu0 0
  %725 = vmatprep.subr.bf16.mxu0 0
  %726 = vmatpush1.bf16.msra.mxu0 0
  %727 = vmatprep.subr.bf16.mxu0 0
  %728 = vmatpush1.bf16.msra.mxu0 0
  %729 = vmatprep.subr.bf16.mxu0 0
  %730 = vmatpush1.bf16.msra.mxu0 0
  %731 = vmatprep.mubr.bf16.mxu0 0
  %732 = vmatmul.mubr.bf16.gmra.mrb[0].mxu0 %v697
  %v733 = vpop.f32.mrb[0].mxu0
  %v734 = vadd.f32 0.0, %v733
  %v735 = vpop.f32.mrb[0].mxu0
  %v736 = vpop.f32.mrb[0].mxu0
  %v737 = vpop.f32.mrb[0].mxu0
  %738 = vdwg.mxu0
  %v739 = vadd.f32 %v143, %v734
  %v740 = vxor.u32 %v739, 2147483648
  %v741 = vmul.f32 %v740, 1.442695
  %v742 = vpow.pop %v741
  %v743 = vadd.f32 %v742, 1.0
  %v744 = vrcp.pop %v743
  %v745 = vmul.f32 1.0, %v744
  %v746 = vadd.f32 %v734, %v222
  %748 = vrot.lane.b32.xlu0 %v746, 64
  %v749 = vpop.permute.xlu0 %748
  %v751 = vmul.f32 %v745, %v749
  %753 = vrot.lane.b32.xlu0 %v751, 64
  %v754 = vpop.permute.xlu0 %753
  %v756 = vadd.f32 %v143, %v754
  %v757 = vtanh.pop %v756
  %v758 = vsub.f32 1.0, %v745
  %760 = vrot.lane.b32.xlu0 %v757, 96
  %v761 = vpop.permute.xlu0 %760
  %v763 = vmul.f32 %v758, %v761
  %v764 = vmul.f32 %v745, %v691
  %v765 = vadd.f32 %v763, %v764
  %767 = vrot.lane.b32.xlu0 %v765, 96
  %v768 = vpop.permute.xlu0 %767
  %770 = vst.msk [vmem:[%s13] sm:$0xff] %vm170, %v768
  %v771 = vpack.c.bf16 %v321, %v247
  %v772 = vpack.c.bf16 %v469, %v395
  %v773 = vpack.c.bf16 %v617, %v543
  %v774 = vpack.c.bf16 %v765, %v691
  %v775 = vld [vmem:[%s6] sm:$0xf]
  %v776 = vld [vmem:[%s6 + $0x4] sm:$0xf]
  %v777 = vld [vmem:[%s6 + $0x8] sm:$0xf]
  %v778 = vld [vmem:[%s6 + $0xc] sm:$0xf]
  %v779 = vld [vmem:[%s8] sm:$0x1]
  %v781 = vlaneseq
  %v782 = vshrl.u32 %v781, 7
  %v783 = vsub.s32 0, %v782
  %v784 = vrot.slane %v779, %v783
  %790 = vrot.lane.b32.xlu0 %v771, 96
  %v791 = vpop.permute.xlu0 %790
  %792 = vrot.lane.b32.xlu0 %v772, 96
  %v793 = vpop.permute.xlu0 %792
  %794 = vrot.lane.b32.xlu0 %v773, 96
  %v795 = vpop.permute.xlu0 %794
  %796 = vrot.lane.b32.xlu0 %v774, 96
  %v797 = vpop.permute.xlu0 %796
  %v802 = vunpack.c.l.b16 %v775
  %v803 = vunpack.c.l.b16 %v776
  %v804 = vunpack.c.l.b16 %v777
  %v805 = vunpack.c.l.b16 %v778
  %v806 = vpack.c.b16 %v803, %v802
  %v807 = vpack.c.b16 %v805, %v804
  %v811 = vsel %vm170, %v791, 0
  %v814 = vsel %vm170, %v793, 0
  %v817 = vsel %vm170, %v795, 0
  %v820 = vsel %vm170, %v797, 0
  %822 = vmatprep.subr.bf16.mxu0 0
  %823 = vmatpush1.bf16.msra.mxu0 %v806
  %824 = vmatprep.subr.bf16.mxu0 0
  %825 = vmatpush1.bf16.msra.mxu0 %v807
  %826 = vmatprep.subr.bf16.mxu0 0
  %827 = vmatpush1.bf16.msra.mxu0 0
  %828 = vmatprep.subr.bf16.mxu0 0
  %829 = vmatpush1.bf16.msra.mxu0 0
  %830 = vmatprep.subr.bf16.mxu0 0
  %831 = vmatpush1.bf16.msra.mxu0 0
  %832 = vmatprep.subr.bf16.mxu0 0
  %833 = vmatpush1.bf16.msra.mxu0 0
  %834 = vmatprep.subr.bf16.mxu0 0
  %835 = vmatpush1.bf16.msra.mxu0 0
  %836 = vmatprep.subr.bf16.mxu0 0
  %837 = vmatpush1.bf16.msra.mxu0 0
  %838 = vmatprep.subr.bf16.mxu0 0
  %839 = vmatpush1.bf16.msra.mxu0 0
  %840 = vmatprep.subr.bf16.mxu0 0
  %841 = vmatpush1.bf16.msra.mxu0 0
  %842 = vmatprep.subr.bf16.mxu0 0
  %843 = vmatpush1.bf16.msra.mxu0 0
  %844 = vmatprep.subr.bf16.mxu0 0
  %845 = vmatpush1.bf16.msra.mxu0 0
  %846 = vmatprep.subr.bf16.mxu0 0
  %847 = vmatpush1.bf16.msra.mxu0 0
  %848 = vmatprep.subr.bf16.mxu0 0
  %849 = vmatpush1.bf16.msra.mxu0 0
  %850 = vmatprep.subr.bf16.mxu0 0
  %851 = vmatpush1.bf16.msra.mxu0 0
  %852 = vmatprep.subr.bf16.mxu0 0
  %853 = vmatpush1.bf16.msra.mxu0 0
  %854 = vmatprep.mubr.bf16.mxu0 0
  %855 = vmatmul.mubr.bf16.gmra.mrb[0].mxu0 %v811
  %v856 = vpop.f32.mrb[0].mxu0
  %v857 = vadd.f32 %v784, %v856
  %v858 = vpop.f32.mrb[0].mxu0
  %v859 = vpop.f32.mrb[0].mxu0
  %v860 = vadd.f32 %v784, %v859
  %v861 = vpop.f32.mrb[0].mxu0
  %862 = vmatprep.mubr.bf16.mxu0 0
  %863 = vmatmul.mubr.bf16.gmra.mrb[0].mxu0 %v814
  %v864 = vpop.f32.mrb[0].mxu0
  %v865 = vadd.f32 %v784, %v864
  %v866 = vpop.f32.mrb[0].mxu0
  %v867 = vpop.f32.mrb[0].mxu0
  %v868 = vadd.f32 %v784, %v867
  %v869 = vpop.f32.mrb[0].mxu0
  %870 = vmatprep.mubr.bf16.mxu0 0
  %871 = vmatmul.mubr.bf16.gmra.mrb[0].mxu0 %v817
  %v872 = vpop.f32.mrb[0].mxu0
  %v873 = vadd.f32 %v784, %v872
  %v874 = vpop.f32.mrb[0].mxu0
  %v875 = vpop.f32.mrb[0].mxu0
  %v876 = vadd.f32 %v784, %v875
  %v877 = vpop.f32.mrb[0].mxu0
  %878 = vmatprep.mubr.bf16.mxu0 0
  %879 = vmatmul.mubr.bf16.gmra.mrb[0].mxu0 %v820
  %v880 = vpop.f32.mrb[0].mxu0
  %v881 = vadd.f32 %v784, %v880
  %v882 = vpop.f32.mrb[0].mxu0
  %v883 = vpop.f32.mrb[0].mxu0
  %v884 = vadd.f32 %v784, %v883
  %v885 = vpop.f32.mrb[0].mxu0
  %886 = vdwg.mxu0
  %v887 = vld [vmem:[%s7] sm:$0xf]
  %v888 = vld [vmem:[%s7 + $0x4] sm:$0xf]
  %v889 = vld [vmem:[%s7 + $0x8] sm:$0xf]
  %v890 = vld [vmem:[%s7 + $0xc] sm:$0xf]
  %v891 = vld [vmem:[%s9] sm:$0x1]
  %v893 = vlaneseq
  %v894 = vshrl.u32 %v893, 7
  %v895 = vsub.s32 0, %v894
  %v896 = vrot.slane %v891, %v895
  %s897 = scalar_lea.vmem %s1, 8
  %v898 = vld [vmem:[%s897] sm:$0xff]
  %v899 = vpack.c.bf16 %v898, %v898
  %v904 = vunpack.c.l.b16 %v887
  %v905 = vunpack.c.l.b16 %v888
  %v906 = vunpack.c.l.b16 %v889
  %v907 = vunpack.c.l.b16 %v890
  %v908 = vpack.c.b16 %v905, %v904
  %v909 = vpack.c.b16 %v907, %v906
  %v913 = vsel %vm170, %v899, 0
  %915 = vmatprep.subr.bf16.mxu0 0
  %916 = vmatpush1.bf16.msra.mxu0 %v908
  %917 = vmatprep.subr.bf16.mxu0 0
  %918 = vmatpush1.bf16.msra.mxu0 %v909
  %919 = vmatprep.subr.bf16.mxu0 0
  %920 = vmatpush1.bf16.msra.mxu0 0
  %921 = vmatprep.subr.bf16.mxu0 0
  %922 = vmatpush1.bf16.msra.mxu0 0
  %923 = vmatprep.subr.bf16.mxu0 0
  %924 = vmatpush1.bf16.msra.mxu0 0
  %925 = vmatprep.subr.bf16.mxu0 0
  %926 = vmatpush1.bf16.msra.mxu0 0
  %927 = vmatprep.subr.bf16.mxu0 0
  %928 = vmatpush1.bf16.msra.mxu0 0
  %929 = vmatprep.subr.bf16.mxu0 0
  %930 = vmatpush1.bf16.msra.mxu0 0
  %931 = vmatprep.subr.bf16.mxu0 0
  %932 = vmatpush1.bf16.msra.mxu0 0
  %933 = vmatprep.subr.bf16.mxu0 0
  %934 = vmatpush1.bf16.msra.mxu0 0
  %935 = vmatprep.subr.bf16.mxu0 0
  %936 = vmatpush1.bf16.msra.mxu0 0
  %937 = vmatprep.subr.bf16.mxu0 0
  %938 = vmatpush1.bf16.msra.mxu0 0
  %939 = vmatprep.subr.bf16.mxu0 0
  %940 = vmatpush1.bf16.msra.mxu0 0
  %941 = vmatprep.subr.bf16.mxu0 0
  %942 = vmatpush1.bf16.msra.mxu0 0
  %943 = vmatprep.subr.bf16.mxu0 0
  %944 = vmatpush1.bf16.msra.mxu0 0
  %945 = vmatprep.subr.bf16.mxu0 0
  %946 = vmatpush1.bf16.msra.mxu0 0
  %947 = vmatprep.mubr.bf16.mxu0 0
  %948 = vmatmul.mubr.bf16.gmra.mrb[0].mxu0 %v913
  %v949 = vpop.f32.mrb[0].mxu0
  %v950 = vadd.f32 0.0, %v949
  %v951 = vpop.f32.mrb[0].mxu0
  %v952 = vpop.f32.mrb[0].mxu0
  %v953 = vpop.f32.mrb[0].mxu0
  %954 = vdwg.mxu0
  %v955 = vadd.f32 %v857, %v950
  %v956 = vxor.u32 %v955, 2147483648
  %v957 = vmul.f32 %v956, 1.442695
  %v958 = vpow.pop %v957
  %v959 = vadd.f32 %v958, 1.0
  %v960 = vrcp.pop %v959
  %v961 = vmul.f32 1.0, %v960
  %962 = vrot.lane.b32.xlu0 %v896, 64
  %v963 = vpop.permute.xlu0 %962
  %v965 = vadd.f32 %v950, %v963
  %967 = vrot.lane.b32.xlu0 %v965, 64
  %v968 = vpop.permute.xlu0 %967
  %v970 = vmul.f32 %v961, %v968
  %972 = vrot.lane.b32.xlu0 %v970, 64
  %v973 = vpop.permute.xlu0 %972
  %v975 = vadd.f32 %v857, %v973
  %v976 = vtanh.pop %v975
  %v977 = vsub.f32 1.0, %v961
  %979 = vrot.lane.b32.xlu0 %v976, 96
  %v980 = vpop.permute.xlu0 %979
  %v982 = vmul.f32 %v977, %v980
  %984 = vrot.lane.b32.xlu0 %v898, 32
  %v985 = vpop.permute.xlu0 %984
  %v987 = vmul.f32 %v961, %v985
  %v988 = vadd.f32 %v982, %v987
  %v989 = vpack.c.bf16 %v988, %v988
  %991 = vrot.lane.b32.xlu0 %v989, 96
  %v992 = vpop.permute.xlu0 %991
  %v994 = vsel %vm170, %v992, 0
  %996 = vmatprep.subr.bf16.mxu0 0
  %997 = vmatpush1.bf16.msra.mxu0 %v908
  %998 = vmatprep.subr.bf16.mxu0 0
  %999 = vmatpush1.bf16.msra.mxu0 %v909
  %1000 = vmatprep.subr.bf16.mxu0 0
  %1001 = vmatpush1.bf16.msra.mxu0 0
  %1002 = vmatprep.subr.bf16.mxu0 0
  %1003 = vmatpush1.bf16.msra.mxu0 0
  %1004 = vmatprep.subr.bf16.mxu0 0
  %1005 = vmatpush1.bf16.msra.mxu0 0
  %1006 = vmatprep.subr.bf16.mxu0 0
  %1007 = vmatpush1.bf16.msra.mxu0 0
  %1008 = vmatprep.subr.bf16.mxu0 0
  %1009 = vmatpush1.bf16.msra.mxu0 0
  %1010 = vmatprep.subr.bf16.mxu0 0
  %1011 = vmatpush1.bf16.msra.mxu0 0
  %1012 = vmatprep.subr.bf16.mxu0 0
  %1013 = vmatpush1.bf16.msra.mxu0 0
  %1014 = vmatprep.subr.bf16.mxu0 0
  %1015 = vmatpush1.bf16.msra.mxu0 0
  %1016 = vmatprep.subr.bf16.mxu0 0
  %1017 = vmatpush1.bf16.msra.mxu0 0
  %1018 = vmatprep.subr.bf16.mxu0 0
  %1019 = vmatpush1.bf16.msra.mxu0 0
  %1020 = vmatprep.subr.bf16.mxu0 0
  %1021 = vmatpush1.bf16.msra.mxu0 0
  %1022 = vmatprep.subr.bf16.mxu0 0
  %1023 = vmatpush1.bf16.msra.mxu0 0
  %1024 = vmatprep.subr.bf16.mxu0 0
  %1025 = vmatpush1.bf16.msra.mxu0 0
  %1026 = vmatprep.subr.bf16.mxu0 0
  %1027 = vmatpush1.bf16.msra.mxu0 0
  %1028 = vmatprep.mubr.bf16.mxu0 0
  %1029 = vmatmul.mubr.bf16.gmra.mrb[0].mxu0 %v994
  %v1030 = vpop.f32.mrb[0].mxu0
  %v1031 = vadd.f32 0.0, %v1030
  %v1032 = vpop.f32.mrb[0].mxu0
  %v1033 = vpop.f32.mrb[0].mxu0
  %v1034 = vpop.f32.mrb[0].mxu0
  %1035 = vdwg.mxu0
  %v1036 = vadd.f32 %v860, %v1031
  %v1037 = vxor.u32 %v1036, 2147483648
  %v1038 = vmul.f32 %v1037, 1.442695
  %v1039 = vpow.pop %v1038
  %v1040 = vadd.f32 %v1039, 1.0
  %v1041 = vrcp.pop %v1040
  %v1042 = vmul.f32 1.0, %v1041
  %v1043 = vadd.f32 %v1031, %v963
  %1045 = vrot.lane.b32.xlu0 %v1043, 64
  %v1046 = vpop.permute.xlu0 %1045
  %v1048 = vmul.f32 %v1042, %v1046
  %1050 = vrot.lane.b32.xlu0 %v1048, 64
  %v1051 = vpop.permute.xlu0 %1050
  %v1053 = vadd.f32 %v860, %v1051
  %v1054 = vtanh.pop %v1053
  %v1055 = vsub.f32 1.0, %v1042
  %1057 = vrot.lane.b32.xlu0 %v1054, 96
  %v1058 = vpop.permute.xlu0 %1057
  %v1060 = vmul.f32 %v1055, %v1058
  %v1061 = vmul.f32 %v1042, %v988
  %v1062 = vadd.f32 %v1060, %v1061
  %v1063 = vpack.c.bf16 %v1062, %v1062
  %1065 = vrot.lane.b32.xlu0 %v1063, 96
  %v1066 = vpop.permute.xlu0 %1065
  %v1068 = vsel %vm170, %v1066, 0
  %1070 = vmatprep.subr.bf16.mxu0 0
  %1071 = vmatpush1.bf16.msra.mxu0 %v908
  %1072 = vmatprep.subr.bf16.mxu0 0
  %1073 = vmatpush1.bf16.msra.mxu0 %v909
  %1074 = vmatprep.subr.bf16.mxu0 0
  %1075 = vmatpush1.bf16.msra.mxu0 0
  %1076 = vmatprep.subr.bf16.mxu0 0
  %1077 = vmatpush1.bf16.msra.mxu0 0
  %1078 = vmatprep.subr.bf16.mxu0 0
  %1079 = vmatpush1.bf16.msra.mxu0 0
  %1080 = vmatprep.subr.bf16.mxu0 0
  %1081 = vmatpush1.bf16.msra.mxu0 0
  %1082 = vmatprep.subr.bf16.mxu0 0
  %1083 = vmatpush1.bf16.msra.mxu0 0
  %1084 = vmatprep.subr.bf16.mxu0 0
  %1085 = vmatpush1.bf16.msra.mxu0 0
  %1086 = vmatprep.subr.bf16.mxu0 0
  %1087 = vmatpush1.bf16.msra.mxu0 0
  %1088 = vmatprep.subr.bf16.mxu0 0
  %1089 = vmatpush1.bf16.msra.mxu0 0
  %1090 = vmatprep.subr.bf16.mxu0 0
  %1091 = vmatpush1.bf16.msra.mxu0 0
  %1092 = vmatprep.subr.bf16.mxu0 0
  %1093 = vmatpush1.bf16.msra.mxu0 0
  %1094 = vmatprep.subr.bf16.mxu0 0
  %1095 = vmatpush1.bf16.msra.mxu0 0
  %1096 = vmatprep.subr.bf16.mxu0 0
  %1097 = vmatpush1.bf16.msra.mxu0 0
  %1098 = vmatprep.subr.bf16.mxu0 0
  %1099 = vmatpush1.bf16.msra.mxu0 0
  %1100 = vmatprep.subr.bf16.mxu0 0
  %1101 = vmatpush1.bf16.msra.mxu0 0
  %1102 = vmatprep.mubr.bf16.mxu0 0
  %1103 = vmatmul.mubr.bf16.gmra.mrb[0].mxu0 %v1068
  %v1104 = vpop.f32.mrb[0].mxu0
  %v1105 = vadd.f32 0.0, %v1104
  %v1106 = vpop.f32.mrb[0].mxu0
  %v1107 = vpop.f32.mrb[0].mxu0
  %v1108 = vpop.f32.mrb[0].mxu0
  %1109 = vdwg.mxu0
  %v1110 = vadd.f32 %v865, %v1105
  %v1111 = vxor.u32 %v1110, 2147483648
  %v1112 = vmul.f32 %v1111, 1.442695
  %v1113 = vpow.pop %v1112
  %v1114 = vadd.f32 %v1113, 1.0
  %v1115 = vrcp.pop %v1114
  %v1116 = vmul.f32 1.0, %v1115
  %v1117 = vadd.f32 %v1105, %v963
  %1119 = vrot.lane.b32.xlu0 %v1117, 64
  %v1120 = vpop.permute.xlu0 %1119
  %v1122 = vmul.f32 %v1116, %v1120
  %1124 = vrot.lane.b32.xlu0 %v1122, 64
  %v1125 = vpop.permute.xlu0 %1124
  %v1127 = vadd.f32 %v865, %v1125
  %v1128 = vtanh.pop %v1127
  %v1129 = vsub.f32 1.0, %v1116
  %1131 = vrot.lane.b32.xlu0 %v1128, 96
  %v1132 = vpop.permute.xlu0 %1131
  %v1134 = vmul.f32 %v1129, %v1132
  %v1135 = vmul.f32 %v1116, %v1062
  %v1136 = vadd.f32 %v1134, %v1135
  %v1137 = vpack.c.bf16 %v1136, %v1136
  %1139 = vrot.lane.b32.xlu0 %v1137, 96
  %v1140 = vpop.permute.xlu0 %1139
  %v1142 = vsel %vm170, %v1140, 0
  %1144 = vmatprep.subr.bf16.mxu0 0
  %1145 = vmatpush1.bf16.msra.mxu0 %v908
  %1146 = vmatprep.subr.bf16.mxu0 0
  %1147 = vmatpush1.bf16.msra.mxu0 %v909
  %1148 = vmatprep.subr.bf16.mxu0 0
  %1149 = vmatpush1.bf16.msra.mxu0 0
  %1150 = vmatprep.subr.bf16.mxu0 0
  %1151 = vmatpush1.bf16.msra.mxu0 0
  %1152 = vmatprep.subr.bf16.mxu0 0
  %1153 = vmatpush1.bf16.msra.mxu0 0
  %1154 = vmatprep.subr.bf16.mxu0 0
  %1155 = vmatpush1.bf16.msra.mxu0 0
  %1156 = vmatprep.subr.bf16.mxu0 0
  %1157 = vmatpush1.bf16.msra.mxu0 0
  %1158 = vmatprep.subr.bf16.mxu0 0
  %1159 = vmatpush1.bf16.msra.mxu0 0
  %1160 = vmatprep.subr.bf16.mxu0 0
  %1161 = vmatpush1.bf16.msra.mxu0 0
  %1162 = vmatprep.subr.bf16.mxu0 0
  %1163 = vmatpush1.bf16.msra.mxu0 0
  %1164 = vmatprep.subr.bf16.mxu0 0
  %1165 = vmatpush1.bf16.msra.mxu0 0
  %1166 = vmatprep.subr.bf16.mxu0 0
  %1167 = vmatpush1.bf16.msra.mxu0 0
  %1168 = vmatprep.subr.bf16.mxu0 0
  %1169 = vmatpush1.bf16.msra.mxu0 0
  %1170 = vmatprep.subr.bf16.mxu0 0
  %1171 = vmatpush1.bf16.msra.mxu0 0
  %1172 = vmatprep.subr.bf16.mxu0 0
  %1173 = vmatpush1.bf16.msra.mxu0 0
  %1174 = vmatprep.subr.bf16.mxu0 0
  %1175 = vmatpush1.bf16.msra.mxu0 0
  %1176 = vmatprep.mubr.bf16.mxu0 0
  %1177 = vmatmul.mubr.bf16.gmra.mrb[0].mxu0 %v1142
  %v1178 = vpop.f32.mrb[0].mxu0
  %v1179 = vadd.f32 0.0, %v1178
  %v1180 = vpop.f32.mrb[0].mxu0
  %v1181 = vpop.f32.mrb[0].mxu0
  %v1182 = vpop.f32.mrb[0].mxu0
  %1183 = vdwg.mxu0
  %v1184 = vadd.f32 %v868, %v1179
  %v1185 = vxor.u32 %v1184, 2147483648
  %v1186 = vmul.f32 %v1185, 1.442695
  %v1187 = vpow.pop %v1186
  %v1188 = vadd.f32 %v1187, 1.0
  %v1189 = vrcp.pop %v1188
  %v1190 = vmul.f32 1.0, %v1189
  %v1191 = vadd.f32 %v1179, %v963
  %1193 = vrot.lane.b32.xlu0 %v1191, 64
  %v1194 = vpop.permute.xlu0 %1193
  %v1196 = vmul.f32 %v1190, %v1194
  %1198 = vrot.lane.b32.xlu0 %v1196, 64
  %v1199 = vpop.permute.xlu0 %1198
  %v1201 = vadd.f32 %v868, %v1199
  %v1202 = vtanh.pop %v1201
  %v1203 = vsub.f32 1.0, %v1190
  %1205 = vrot.lane.b32.xlu0 %v1202, 96
  %v1206 = vpop.permute.xlu0 %1205
  %v1208 = vmul.f32 %v1203, %v1206
  %v1209 = vmul.f32 %v1190, %v1136
  %v1210 = vadd.f32 %v1208, %v1209
  %v1211 = vpack.c.bf16 %v1210, %v1210
  %1213 = vrot.lane.b32.xlu0 %v1211, 96
  %v1214 = vpop.permute.xlu0 %1213
  %v1216 = vsel %vm170, %v1214, 0
  %1218 = vmatprep.subr.bf16.mxu0 0
  %1219 = vmatpush1.bf16.msra.mxu0 %v908
  %1220 = vmatprep.subr.bf16.mxu0 0
  %1221 = vmatpush1.bf16.msra.mxu0 %v909
  %1222 = vmatprep.subr.bf16.mxu0 0
  %1223 = vmatpush1.bf16.msra.mxu0 0
  %1224 = vmatprep.subr.bf16.mxu0 0
  %1225 = vmatpush1.bf16.msra.mxu0 0
  %1226 = vmatprep.subr.bf16.mxu0 0
  %1227 = vmatpush1.bf16.msra.mxu0 0
  %1228 = vmatprep.subr.bf16.mxu0 0
  %1229 = vmatpush1.bf16.msra.mxu0 0
  %1230 = vmatprep.subr.bf16.mxu0 0
  %1231 = vmatpush1.bf16.msra.mxu0 0
  %1232 = vmatprep.subr.bf16.mxu0 0
  %1233 = vmatpush1.bf16.msra.mxu0 0
  %1234 = vmatprep.subr.bf16.mxu0 0
  %1235 = vmatpush1.bf16.msra.mxu0 0
  %1236 = vmatprep.subr.bf16.mxu0 0
  %1237 = vmatpush1.bf16.msra.mxu0 0
  %1238 = vmatprep.subr.bf16.mxu0 0
  %1239 = vmatpush1.bf16.msra.mxu0 0
  %1240 = vmatprep.subr.bf16.mxu0 0
  %1241 = vmatpush1.bf16.msra.mxu0 0
  %1242 = vmatprep.subr.bf16.mxu0 0
  %1243 = vmatpush1.bf16.msra.mxu0 0
  %1244 = vmatprep.subr.bf16.mxu0 0
  %1245 = vmatpush1.bf16.msra.mxu0 0
  %1246 = vmatprep.subr.bf16.mxu0 0
  %1247 = vmatpush1.bf16.msra.mxu0 0
  %1248 = vmatprep.subr.bf16.mxu0 0
  %1249 = vmatpush1.bf16.msra.mxu0 0
  %1250 = vmatprep.mubr.bf16.mxu0 0
  %1251 = vmatmul.mubr.bf16.gmra.mrb[0].mxu0 %v1216
  %v1252 = vpop.f32.mrb[0].mxu0
  %v1253 = vadd.f32 0.0, %v1252
  %v1254 = vpop.f32.mrb[0].mxu0
  %v1255 = vpop.f32.mrb[0].mxu0
  %v1256 = vpop.f32.mrb[0].mxu0
  %1257 = vdwg.mxu0
  %v1258 = vadd.f32 %v873, %v1253
  %v1259 = vxor.u32 %v1258, 2147483648
  %v1260 = vmul.f32 %v1259, 1.442695
  %v1261 = vpow.pop %v1260
  %v1262 = vadd.f32 %v1261, 1.0
  %v1263 = vrcp.pop %v1262
  %v1264 = vmul.f32 1.0, %v1263
  %v1265 = vadd.f32 %v1253, %v963
  %1267 = vrot.lane.b32.xlu0 %v1265, 64
  %v1268 = vpop.permute.xlu0 %1267
  %v1270 = vmul.f32 %v1264, %v1268
  %1272 = vrot.lane.b32.xlu0 %v1270, 64
  %v1273 = vpop.permute.xlu0 %1272
  %v1275 = vadd.f32 %v873, %v1273
  %v1276 = vtanh.pop %v1275
  %v1277 = vsub.f32 1.0, %v1264
  %1279 = vrot.lane.b32.xlu0 %v1276, 96
  %v1280 = vpop.permute.xlu0 %1279
  %v1282 = vmul.f32 %v1277, %v1280
  %v1283 = vmul.f32 %v1264, %v1210
  %v1284 = vadd.f32 %v1282, %v1283
  %v1285 = vpack.c.bf16 %v1284, %v1284
  %1287 = vrot.lane.b32.xlu0 %v1285, 96
  %v1288 = vpop.permute.xlu0 %1287
  %v1290 = vsel %vm170, %v1288, 0
  %1292 = vmatprep.subr.bf16.mxu0 0
  %1293 = vmatpush1.bf16.msra.mxu0 %v908
  %1294 = vmatprep.subr.bf16.mxu0 0
  %1295 = vmatpush1.bf16.msra.mxu0 %v909
  %1296 = vmatprep.subr.bf16.mxu0 0
  %1297 = vmatpush1.bf16.msra.mxu0 0
  %1298 = vmatprep.subr.bf16.mxu0 0
  %1299 = vmatpush1.bf16.msra.mxu0 0
  %1300 = vmatprep.subr.bf16.mxu0 0
  %1301 = vmatpush1.bf16.msra.mxu0 0
  %1302 = vmatprep.subr.bf16.mxu0 0
  %1303 = vmatpush1.bf16.msra.mxu0 0
  %1304 = vmatprep.subr.bf16.mxu0 0
  %1305 = vmatpush1.bf16.msra.mxu0 0
  %1306 = vmatprep.subr.bf16.mxu0 0
  %1307 = vmatpush1.bf16.msra.mxu0 0
  %1308 = vmatprep.subr.bf16.mxu0 0
  %1309 = vmatpush1.bf16.msra.mxu0 0
  %1310 = vmatprep.subr.bf16.mxu0 0
  %1311 = vmatpush1.bf16.msra.mxu0 0
  %1312 = vmatprep.subr.bf16.mxu0 0
  %1313 = vmatpush1.bf16.msra.mxu0 0
  %1314 = vmatprep.subr.bf16.mxu0 0
  %1315 = vmatpush1.bf16.msra.mxu0 0
  %1316 = vmatprep.subr.bf16.mxu0 0
  %1317 = vmatpush1.bf16.msra.mxu0 0
  %1318 = vmatprep.subr.bf16.mxu0 0
  %1319 = vmatpush1.bf16.msra.mxu0 0
  %1320 = vmatprep.subr.bf16.mxu0 0
  %1321 = vmatpush1.bf16.msra.mxu0 0
  %1322 = vmatprep.subr.bf16.mxu0 0
  %1323 = vmatpush1.bf16.msra.mxu0 0
  %1324 = vmatprep.mubr.bf16.mxu0 0
  %1325 = vmatmul.mubr.bf16.gmra.mrb[0].mxu0 %v1290
  %v1326 = vpop.f32.mrb[0].mxu0
  %v1327 = vadd.f32 0.0, %v1326
  %v1328 = vpop.f32.mrb[0].mxu0
  %v1329 = vpop.f32.mrb[0].mxu0
  %v1330 = vpop.f32.mrb[0].mxu0
  %1331 = vdwg.mxu0
  %v1332 = vadd.f32 %v876, %v1327
  %v1333 = vxor.u32 %v1332, 2147483648
  %v1334 = vmul.f32 %v1333, 1.442695
  %v1335 = vpow.pop %v1334
  %v1336 = vadd.f32 %v1335, 1.0
  %v1337 = vrcp.pop %v1336
  %v1338 = vmul.f32 1.0, %v1337
  %v1339 = vadd.f32 %v1327, %v963
  %1341 = vrot.lane.b32.xlu0 %v1339, 64
  %v1342 = vpop.permute.xlu0 %1341
  %v1344 = vmul.f32 %v1338, %v1342
  %1346 = vrot.lane.b32.xlu0 %v1344, 64
  %v1347 = vpop.permute.xlu0 %1346
  %v1349 = vadd.f32 %v876, %v1347
  %v1350 = vtanh.pop %v1349
  %v1351 = vsub.f32 1.0, %v1338
  %1353 = vrot.lane.b32.xlu0 %v1350, 96
  %v1354 = vpop.permute.xlu0 %1353
  %v1356 = vmul.f32 %v1351, %v1354
  %v1357 = vmul.f32 %v1338, %v1284
  %v1358 = vadd.f32 %v1356, %v1357
  %v1359 = vpack.c.bf16 %v1358, %v1358
  %1361 = vrot.lane.b32.xlu0 %v1359, 96
  %v1362 = vpop.permute.xlu0 %1361
  %v1364 = vsel %vm170, %v1362, 0
  %1366 = vmatprep.subr.bf16.mxu0 0
  %1367 = vmatpush1.bf16.msra.mxu0 %v908
  %1368 = vmatprep.subr.bf16.mxu0 0
  %1369 = vmatpush1.bf16.msra.mxu0 %v909
  %1370 = vmatprep.subr.bf16.mxu0 0
  %1371 = vmatpush1.bf16.msra.mxu0 0
  %1372 = vmatprep.subr.bf16.mxu0 0
  %1373 = vmatpush1.bf16.msra.mxu0 0
  %1374 = vmatprep.subr.bf16.mxu0 0
  %1375 = vmatpush1.bf16.msra.mxu0 0
  %1376 = vmatprep.subr.bf16.mxu0 0
  %1377 = vmatpush1.bf16.msra.mxu0 0
  %1378 = vmatprep.subr.bf16.mxu0 0
  %1379 = vmatpush1.bf16.msra.mxu0 0
  %1380 = vmatprep.subr.bf16.mxu0 0
  %1381 = vmatpush1.bf16.msra.mxu0 0
  %1382 = vmatprep.subr.bf16.mxu0 0
  %1383 = vmatpush1.bf16.msra.mxu0 0
  %1384 = vmatprep.subr.bf16.mxu0 0
  %1385 = vmatpush1.bf16.msra.mxu0 0
  %1386 = vmatprep.subr.bf16.mxu0 0
  %1387 = vmatpush1.bf16.msra.mxu0 0
  %1388 = vmatprep.subr.bf16.mxu0 0
  %1389 = vmatpush1.bf16.msra.mxu0 0
  %1390 = vmatprep.subr.bf16.mxu0 0
  %1391 = vmatpush1.bf16.msra.mxu0 0
  %1392 = vmatprep.subr.bf16.mxu0 0
  %1393 = vmatpush1.bf16.msra.mxu0 0
  %1394 = vmatprep.subr.bf16.mxu0 0
  %1395 = vmatpush1.bf16.msra.mxu0 0
  %1396 = vmatprep.subr.bf16.mxu0 0
  %1397 = vmatpush1.bf16.msra.mxu0 0
  %1398 = vmatprep.mubr.bf16.mxu0 0
  %1399 = vmatmul.mubr.bf16.gmra.mrb[0].mxu0 %v1364
  %v1400 = vpop.f32.mrb[0].mxu0
  %v1401 = vadd.f32 0.0, %v1400
  %v1402 = vpop.f32.mrb[0].mxu0
  %v1403 = vpop.f32.mrb[0].mxu0
  %v1404 = vpop.f32.mrb[0].mxu0
  %1405 = vdwg.mxu0
  %v1406 = vadd.f32 %v881, %v1401
  %v1407 = vxor.u32 %v1406, 2147483648
  %v1408 = vmul.f32 %v1407, 1.442695
  %v1409 = vpow.pop %v1408
  %v1410 = vadd.f32 %v1409, 1.0
  %v1411 = vrcp.pop %v1410
  %v1412 = vmul.f32 1.0, %v1411
  %v1413 = vadd.f32 %v1401, %v963
  %1415 = vrot.lane.b32.xlu0 %v1413, 64
  %v1416 = vpop.permute.xlu0 %1415
  %v1418 = vmul.f32 %v1412, %v1416
  %1420 = vrot.lane.b32.xlu0 %v1418, 64
  %v1421 = vpop.permute.xlu0 %1420
  %v1423 = vadd.f32 %v881, %v1421
  %v1424 = vtanh.pop %v1423
  %v1425 = vsub.f32 1.0, %v1412
  %1427 = vrot.lane.b32.xlu0 %v1424, 96
  %v1428 = vpop.permute.xlu0 %1427
  %v1430 = vmul.f32 %v1425, %v1428
  %v1431 = vmul.f32 %v1412, %v1358
  %v1432 = vadd.f32 %v1430, %v1431
  %v1433 = vpack.c.bf16 %v1432, %v1432
  %1435 = vrot.lane.b32.xlu0 %v1433, 96
  %v1436 = vpop.permute.xlu0 %1435
  %v1438 = vsel %vm170, %v1436, 0
  %1440 = vmatprep.subr.bf16.mxu0 0
  %1441 = vmatpush1.bf16.msra.mxu0 %v908
  %1442 = vmatprep.subr.bf16.mxu0 0
  %1443 = vmatpush1.bf16.msra.mxu0 %v909
  %1444 = vmatprep.subr.bf16.mxu0 0
  %1445 = vmatpush1.bf16.msra.mxu0 0
  %1446 = vmatprep.subr.bf16.mxu0 0
  %1447 = vmatpush1.bf16.msra.mxu0 0
  %1448 = vmatprep.subr.bf16.mxu0 0
  %1449 = vmatpush1.bf16.msra.mxu0 0
  %1450 = vmatprep.subr.bf16.mxu0 0
  %1451 = vmatpush1.bf16.msra.mxu0 0
  %1452 = vmatprep.subr.bf16.mxu0 0
  %1453 = vmatpush1.bf16.msra.mxu0 0
  %1454 = vmatprep.subr.bf16.mxu0 0
  %1455 = vmatpush1.bf16.msra.mxu0 0
  %1456 = vmatprep.subr.bf16.mxu0 0
  %1457 = vmatpush1.bf16.msra.mxu0 0
  %1458 = vmatprep.subr.bf16.mxu0 0
  %1459 = vmatpush1.bf16.msra.mxu0 0
  %1460 = vmatprep.subr.bf16.mxu0 0
  %1461 = vmatpush1.bf16.msra.mxu0 0
  %1462 = vmatprep.subr.bf16.mxu0 0
  %1463 = vmatpush1.bf16.msra.mxu0 0
  %1464 = vmatprep.subr.bf16.mxu0 0
  %1465 = vmatpush1.bf16.msra.mxu0 0
  %1466 = vmatprep.subr.bf16.mxu0 0
  %1467 = vmatpush1.bf16.msra.mxu0 0
  %1468 = vmatprep.subr.bf16.mxu0 0
  %1469 = vmatpush1.bf16.msra.mxu0 0
  %1470 = vmatprep.subr.bf16.mxu0 0
  %1471 = vmatpush1.bf16.msra.mxu0 0
  %1472 = vmatprep.mubr.bf16.mxu0 0
  %1473 = vmatmul.mubr.bf16.gmra.mrb[0].mxu0 %v1438
  %v1474 = vpop.f32.mrb[0].mxu0
  %v1475 = vadd.f32 0.0, %v1474
  %v1476 = vpop.f32.mrb[0].mxu0
  %v1477 = vpop.f32.mrb[0].mxu0
  %v1478 = vpop.f32.mrb[0].mxu0
  %1479 = vdwg.mxu0
  %v1480 = vadd.f32 %v884, %v1475
  %v1481 = vxor.u32 %v1480, 2147483648
  %v1482 = vmul.f32 %v1481, 1.442695
  %v1483 = vpow.pop %v1482
  %v1484 = vadd.f32 %v1483, 1.0
  %v1485 = vrcp.pop %v1484
  %v1486 = vmul.f32 1.0, %v1485
  %v1487 = vadd.f32 %v1475, %v963
  %1489 = vrot.lane.b32.xlu0 %v1487, 64
  %v1490 = vpop.permute.xlu0 %1489
  %v1492 = vmul.f32 %v1486, %v1490
  %1494 = vrot.lane.b32.xlu0 %v1492, 64
  %v1495 = vpop.permute.xlu0 %1494
  %v1497 = vadd.f32 %v884, %v1495
  %v1498 = vtanh.pop %v1497
  %v1499 = vsub.f32 1.0, %v1486
  %1501 = vrot.lane.b32.xlu0 %v1498, 96
  %v1502 = vpop.permute.xlu0 %1501
  %v1504 = vmul.f32 %v1499, %v1502
  %v1505 = vmul.f32 %v1486, %v1432
  %v1506 = vadd.f32 %v1504, %v1505
  %1508 = vrot.lane.b32.xlu0 %v1506, 96
  %v1509 = vpop.permute.xlu0 %1508
  %s1511 = scalar_lea.vmem %s13, 8
  %1512 = vst.msk [vmem:[%s1511] sm:$0xff] %vm170, %v1509
  %v1513 = vmax.f32 %v1506, 0.0
  %v1514 = vpack.c.bf16 %v1513, %v1513
  %v1515 = vld [vmem:[%s10] sm:$0xf]
  %v1516 = vld [vmem:[%s10 + $0x4] sm:$0xf]
  %v1517 = vld [vmem:[%s10 + $0x8] sm:$0xf]
  %v1518 = vld [vmem:[%s10 + $0xc] sm:$0xf]
  %v1519 = vld [vmem:[%s11] sm:$0x1]
  %v1521 = vlaneseq
  %v1522 = vshrl.u32 %v1521, 7
  %v1523 = vsub.s32 0, %v1522
  %v1524 = vrot.slane %v1519, %v1523
  %1527 = vrot.lane.b32.xlu0 %v1514, 96
  %v1528 = vpop.permute.xlu0 %1527
  %v1533 = vunpack.c.l.b16 %v1515
  %v1534 = vunpack.c.l.b16 %v1516
  %v1535 = vunpack.c.l.b16 %v1517
  %v1536 = vunpack.c.l.b16 %v1518
  %v1537 = vpack.c.b16 %v1534, %v1533
  %v1538 = vpack.c.b16 %v1536, %v1535
  %v1542 = vsel %vm170, %v1528, 0
  %1544 = vmatprep.subr.bf16.mxu0 0
  %1545 = vmatpush1.bf16.msra.mxu0 %v1537
  %1546 = vmatprep.subr.bf16.mxu0 0
  %1547 = vmatpush1.bf16.msra.mxu0 %v1538
  %1548 = vmatprep.subr.bf16.mxu0 0
  %1549 = vmatpush1.bf16.msra.mxu0 0
  %1550 = vmatprep.subr.bf16.mxu0 0
  %1551 = vmatpush1.bf16.msra.mxu0 0
  %1552 = vmatprep.subr.bf16.mxu0 0
  %1553 = vmatpush1.bf16.msra.mxu0 0
  %1554 = vmatprep.subr.bf16.mxu0 0
  %1555 = vmatpush1.bf16.msra.mxu0 0
  %1556 = vmatprep.subr.bf16.mxu0 0
  %1557 = vmatpush1.bf16.msra.mxu0 0
  %1558 = vmatprep.subr.bf16.mxu0 0
  %1559 = vmatpush1.bf16.msra.mxu0 0
  %1560 = vmatprep.subr.bf16.mxu0 0
  %1561 = vmatpush1.bf16.msra.mxu0 0
  %1562 = vmatprep.subr.bf16.mxu0 0
  %1563 = vmatpush1.bf16.msra.mxu0 0
  %1564 = vmatprep.subr.bf16.mxu0 0
  %1565 = vmatpush1.bf16.msra.mxu0 0
  %1566 = vmatprep.subr.bf16.mxu0 0
  %1567 = vmatpush1.bf16.msra.mxu0 0
  %1568 = vmatprep.subr.bf16.mxu0 0
  %1569 = vmatpush1.bf16.msra.mxu0 0
  %1570 = vmatprep.subr.bf16.mxu0 0
  %1571 = vmatpush1.bf16.msra.mxu0 0
  %1572 = vmatprep.subr.bf16.mxu0 0
  %1573 = vmatpush1.bf16.msra.mxu0 0
  %1574 = vmatprep.subr.bf16.mxu0 0
  %1575 = vmatpush1.bf16.msra.mxu0 0
  %1576 = vmatprep.mubr.bf16.mxu0 0
  %1577 = vmatmul.mubr.bf16.gmra.mrb[0].mxu0 %v1542
  %v1578 = vpop.f32.mrb[0].mxu0
  %v1579 = vadd.f32 %v1524, %v1578
  %v1580 = vpop.f32.mrb[0].mxu0
  %v1581 = vpop.f32.mrb[0].mxu0
  %v1582 = vpop.f32.mrb[0].mxu0
  %1583 = vdwg.mxu0
  %vm1584 = vcmask 31744
  %1585 = vst.msk [vmem:[%s12] sm:$0xff] %vm1584, %v1579
  // Predicated region
  $region50: #{gru_model_forward.1} parent=0 // pred_check
    _
  $region51: #{gru_model_forward.1} parent=0 // pred_check_branch
    %1587 = sbr.rel (0) target = $region53
  $region52: #{gru_model_forward.1} parent=0 // pred_region
    _
  $region53: #{gru_model_forward.1} parent=0 // pred_fallthru
    _
  // Predicated region
  $region54: #{gru_model_forward.1} parent=0 // pred_check
    _
  $region55: #{gru_model_forward.1} parent=0 // pred_check_branch
    %1589 = sbr.rel (0) target = $region57
  $region56: #{gru_model_forward.1} parent=0 // pred_region
    _
  $region57: #{gru_model_forward.1} parent=0 // pred_fallthru
    _
  // Predicated region
  $region58: #{gru_model_forward.1} parent=0 // pred_check
    _
  $region59: #{gru_model_forward.1} parent=0 // pred_check_branch
    %1591 = sbr.rel (0) target = $region61
  $region60: #{gru_model_forward.1} parent=0 // pred_region
    _
  $region61: #{gru_model_forward.1} parent=0 // pred_fallthru
    _
  // Predicated region
  $region62: #{gru_model_forward.1} parent=0 // pred_check
    _
  $region63: #{gru_model_forward.1} parent=0 // pred_check_branch
    %1593 = sbr.rel (0) target = $region65
  $region64: #{gru_model_forward.1} parent=0 // pred_region
    _
  $region65: #{gru_model_forward.1} parent=0 // pred_fallthru
    _

</llo_original>
